<compile_context>
chip_gen: v7x
topology: tpu7x:2x2x1
jax: 0.10.0
libtpu: 0.0.40
codegen_flags: <defaults>
</compile_context>

<pallas_src>
import jax
import jax.numpy as jnp
from jax.experimental import pallas as pl
from jax.experimental.pallas import tpu as pltpu

NUM_CLASSES = 2
FEAT_DIM = 1536        # EfficientNet-b3 final feature channels
N_PAD = 128            # lane-dense padded class dimension (unmasked stores)
TB_MAX = 32            # max batch tile (v6e/v7x roofline); VMEM bounded explicitly below


def _head_kernel(f_ref, w_ref, b_ref, o_ref):
    # f_ref: (tb, S, C)   bf16 backbone features (S = H*W spatial positions)
    # w_ref: (C, N_PAD)   bf16 Linear weight, transposed, zero-padded, pre-scaled by 1/S
    # b_ref: (1, N_PAD)   f32  Linear bias, zero-padded
    # o_ref: (tb, N_PAD)  f32  padded logits
    tb, s, c = f_ref.shape
    # Mean-pool + Linear fused into ONE MXU matmul (bf16 operands, f32 accumulation). The spatial
    # reduction happens post-matmul on the 12x-smaller (tb, S, N_PAD) result instead of an f32
    # upcast + VPU sum over the full (tb, S, C) tile.
    prod = jnp.dot(f_ref[...].reshape(tb * s, c), w_ref[...],
                   preferred_element_type=jnp.float32)            # (tb*S, N_PAD)
    pooled = jnp.sum(prod.reshape(tb, s, N_PAD), axis=1)          # (tb, N_PAD)
    o_ref[...] = pooled + b_ref[...]                              # bias broadcast over batch tile


def prepare_head_params(weight, bias, spatial_size):
    """Per-model (NOT per-call) prep of the nn.Linear params for the kernel.

    weight: (num_classes, 1536) f32 (PyTorch nn.Linear layout); bias: (num_classes,) f32.
    Returns (w_pad, b_pad): transposed, zero-padded to 128 classes, mean-pool 1/S folded into the
    weight, weight cast to bf16 (MXU operand dtype).
    """
    n_cls = weight.shape[0]
    assert weight.shape == (n_cls, FEAT_DIM) and bias.shape == (n_cls,) and n_cls <= N_PAD
    inv_s = jnp.float32(1.0 / spatial_size)
    w_scaled = (weight.T.astype(jnp.float32) * inv_s).astype(jnp.bfloat16)
    w_pad = jnp.zeros((FEAT_DIM, N_PAD), jnp.bfloat16).at[:, :n_cls].set(w_scaled)
    b_pad = jnp.zeros((1, N_PAD), jnp.float32).at[0, :n_cls].set(bias.astype(jnp.float32))
    return w_pad, b_pad


def _choose_batch_tile(batch):
    """>= 2 grid steps whenever sublane-aligned tiles allow it (v7x dual-TC sharding + pipelined
    feature DMA), capped at TB_MAX for the VMEM budget; tiny batches use one full-batch tile."""
    if batch > TB_MAX:
        return TB_MAX
    if batch >= 16:
        return 8 * pl.cdiv(pl.cdiv(batch, 2), 8)   # ~batch/2, rounded up to a multiple of 8
    return batch


def bird_classifier_head(features_nhwc, w_pad, b_pad):
    """Pooling + classifier head of BirdClassifier (eval mode; Dropout == identity).

    features_nhwc: (B, H, W, 1536) backbone output in NHWC (channels already on the lane axis —
                   no transpose); streamed as bf16.
    w_pad, b_pad:  from prepare_head_params (precomputed once per model).
    returns logits (B, NUM_CLASSES) f32.
    """
    B, H, W, C = features_nhwc.shape
    assert C == FEAT_DIM
    S = H * W
    f = features_nhwc.reshape(B, S, C).astype(jnp.bfloat16)   # contiguous reshape — no HBM copy

    tb = _choose_batch_tile(B)
    nb = pl.cdiv(B, tb)

    # Explicit scoped-VMEM budget for this tiling (double-buffered feature tiles dominate), so
    # TB_MAX=32 tiles compile on every generation (v7x: 64 MiB physical; v5e: 16 MiB default).
    vmem_need = (2 * tb * S * C * 2        # 2x bf16 feature tiles (pipeline double buffer)
                 + C * N_PAD * 2           # bf16 weight, single-buffered
                 + N_PAD * 4               # f32 bias, single-buffered
                 + tb * S * N_PAD * 4      # f32 MXU result before the spatial sum
                 + 2 * tb * N_PAD * 4)     # 2x f32 output tiles
    vmem_limit = min(int(1.5 * vmem_need) + (8 << 20), 48 << 20)

    cost = pl.CostEstimate(
        flops=2 * B * S * C * N_PAD + B * S * N_PAD,
        transcendentals=0,
        bytes_accessed=B * S * C * 2 + C * N_PAD * 2 + N_PAD * 4 + B * N_PAD * 4,
    )

    out_pad = pl.pallas_call(
        _head_kernel,
        out_shape=jax.ShapeDtypeStruct((B, N_PAD), jnp.float32),
        grid_spec=pltpu.PrefetchScalarGridSpec(
            num_scalar_prefetch=0,
            grid=(nb,),                                        # batch-tiled -> pipelined DMA
            in_specs=[
                pl.BlockSpec((tb, S, C), lambda i: (i, 0, 0)),             # streamed features
                pl.BlockSpec((C, N_PAD), lambda i: (0, 0),
                             pipeline_mode=pl.Buffered(1)),                # resident weight
                pl.BlockSpec((1, N_PAD), lambda i: (0, 0),
                             pipeline_mode=pl.Buffered(1)),                # resident bias
            ],
            out_specs=pl.BlockSpec((tb, N_PAD), lambda i: (i, 0)),
        ),
        compiler_params=pltpu.CompilerParams(
            dimension_semantics=("parallel",),                 # independent batch tiles (2 TCs)
            vmem_limit_bytes=vmem_limit,
        ),
        cost_estimate=cost,
    )(f, w_pad, b_pad)

    # NOTE: when B % tb != 0, the padded rows of the last feature tile hold garbage, but every
    # output row depends only on its own input row and Pallas masks the OOB writeback, so valid
    # rows are unaffected. Any future change that mixes batch rows must handle this explicitly.
    return out_pad[:, :NUM_CLASSES]


if __name__ == "__main__":
    key = jax.random.PRNGKey(0)
    k_feat, k_w, k_b = jax.random.split(key, 3)

    # Small deterministic stand-in for the backbone's output feature map, NHWC, bf16.
    # (Real b3 at 300x300 input is (B, 10, 10, 1536).)  B=16 exercises the >=2-grid-step path
    # (two 8-row tiles -> both v7x TensorCores + DMA/compute overlap).
    B, H, W = 16, 4, 4
    features = jax.random.normal(k_feat, (B, H, W, FEAT_DIM), jnp.float32).astype(jnp.bfloat16)

    # Deterministic nn.Linear(1536, 2) init (PyTorch default U(-1/sqrt(fan_in), +)).
    bound = 1.0 / jnp.sqrt(jnp.float32(FEAT_DIM))
    weight = jax.random.uniform(k_w, (NUM_CLASSES, FEAT_DIM), jnp.float32, -bound, bound)
    bias = jax.random.uniform(k_b, (NUM_CLASSES,), jnp.float32, -bound, bound)

    # Per-model parameter prep, hoisted out of the per-call path.
    w_pad, b_pad = prepare_head_params(weight, bias, spatial_size=H * W)

    head = jax.jit(bird_classifier_head)
    logits = jax.block_until_ready(head(features, w_pad, b_pad))

    # Pure-JAX reference: adaptive_avg_pool2d(.,1).flatten(1) -> Dropout(eval)=id -> Linear.
    pooled_ref = jnp.mean(features.astype(jnp.float32), axis=(1, 2))
    ref = jnp.dot(pooled_ref, weight.T, precision=jax.lax.Precision.HIGHEST) + bias

    assert logits.shape == (B, NUM_CLASSES)
    max_err = jnp.max(jnp.abs(logits - ref))
    assert max_err < 2e-3, f"max abs err {max_err}"

    print("KERNEL_OK")
</pallas_src>

<mosaic_0001>
module attributes {stable_mosaic.version = 11 : i64} {
  func.func @_head_kernel(%arg0: i32, %arg1: memref<8x16x1536xbf16, #tpu.memory_space<vmem>>, %arg2: memref<1536x128xbf16, #tpu.memory_space<vmem>>, %arg3: memref<1x128xf32, #tpu.memory_space<vmem>>, %arg4: memref<8x128xf32, #tpu.memory_space<vmem>>) attributes {dimension_semantics = [#tpu.dimension_semantics<parallel>], iteration_bounds = array<i64: 2>, scalar_prefetch = 0 : i64, scratch_operands = 0 : i64, tpu.core_type = #tpu.core_type<tc>, window_params = [{transform_indices = @transform_0, window_bounds = array<i64: 8, 16, 1536>}, {pipeline_mode = #tpu.pipeline_mode<synchronous>, transform_indices = @transform_1, window_bounds = array<i64: 1536, 128>}, {pipeline_mode = #tpu.pipeline_mode<synchronous>, transform_indices = @transform_2, window_bounds = array<i64: 1, 128>}, {transform_indices = @transform_3, window_bounds = array<i64: 8, 128>}]} {
    %c0 = arith.constant 0 : index
    %c0_0 = arith.constant 0 : index
    %c0_1 = arith.constant 0 : index
    %0 = vector.load %arg1[%c0, %c0_0, %c0_1] : memref<8x16x1536xbf16, #tpu.memory_space<vmem>>, vector<8x16x1536xbf16>
    %1 = vector.shape_cast %0 : vector<8x16x1536xbf16> to vector<128x1536xbf16>
    %c0_2 = arith.constant 0 : index
    %c0_3 = arith.constant 0 : index
    %2 = vector.load %arg2[%c0_2, %c0_3] : memref<1536x128xbf16, #tpu.memory_space<vmem>>, vector<1536x128xbf16>
    %cst = arith.constant dense<0.000000e+00> : vector<128x128xf32>
    %3 = tpu.matmul %1, %2, %cst {dimension_numbers = #tpu.dot_dimension_numbers<[1], [0], [0], [1], [0, 0, 1, 1], [], []>} : vector<128x1536xbf16>, vector<1536x128xbf16>, vector<128x128xf32> -> vector<128x128xf32>
    %4 = vector.shape_cast %3 : vector<128x128xf32> to vector<8x16x128xf32>
    %cst_4 = arith.constant dense<0.000000e+00> : vector<8x128xf32>
    %5 = vector.multi_reduction <add>, %4, %cst_4 [1] : vector<8x16x128xf32> to vector<8x128xf32>
    %c0_5 = arith.constant 0 : index
    %c0_6 = arith.constant 0 : index
    %6 = vector.load %arg3[%c0_5, %c0_6] : memref<1x128xf32, #tpu.memory_space<vmem>>, vector<1x128xf32>
    %7 = vector.broadcast %6 : vector<1x128xf32> to vector<8x128xf32>
    %8 = arith.addf %5, %7 : vector<8x128xf32>
    %c0_7 = arith.constant 0 : index
    %c0_8 = arith.constant 0 : index
    %9 = vector.load %arg4[%c0_7, %c0_8] : memref<8x128xf32, #tpu.memory_space<vmem>>, vector<8x128xf32>
    tpu.vector_store %arg4[%c0_7, %c0_8], %8 {strides = array<i32>} : memref<8x128xf32, #tpu.memory_space<vmem>>, vector<8x128xf32>,
    return
  }
  func.func @transform_0(%arg0: i32) -> (i32, i32, i32) {
    %c0_i32 = arith.constant 0 : i32
    %c0_i32_0 = arith.constant 0 : i32
    %c0_i32_1 = arith.constant 0 : i32
    return %arg0, %c0_i32, %c0_i32_0 : i32, i32, i32
  }
  func.func @transform_1(%arg0: i32) -> (i32, i32) {
    %c0_i32 = arith.constant 0 : i32
    %c0_i32_0 = arith.constant 0 : i32
    %c0_i32_1 = arith.constant 0 : i32
    return %c0_i32, %c0_i32_0 : i32, i32
  }
  func.func @transform_2(%arg0: i32) -> (i32, i32) {
    %c0_i32 = arith.constant 0 : i32
    %c0_i32_0 = arith.constant 0 : i32
    %c0_i32_1 = arith.constant 0 : i32
    return %c0_i32, %c0_i32_0 : i32, i32
  }
  func.func @transform_3(%arg0: i32) -> (i32, i32) {
    %c0_i32 = arith.constant 0 : i32
    %c0_i32_0 = arith.constant 0 : i32
    return %arg0, %c0_i32 : i32, i32
  }
}

</mosaic_0001>

<llo_original>
// kernel: bird_classifier_head.1
$region0: #{bird_classifier_head.1}
  #allocation0 [shape = 'u32[]', space=smem, size = 0x4, offset = 0x4, fixed_abs, tag = 'smem constant byte address 0x4 - core index']
  #allocation1 [shape = 'u32[144,128]{1,0:T(1,128)}', space=vmem, size = 0x12000, scoped, tag = 'internal scratch']
  %s0 = inlined_call_operand.vmem [shape: bf16[16,16,1536], index: 0, kind: input, shape index: {}]
  %s1 = inlined_call_operand.vmem [shape: bf16[1536,128], index: 1, kind: input, shape index: {}]
  %s2 = inlined_call_operand.vmem [shape: f32[1,128], index: 2, kind: input, shape index: {}]
  %s3 = inlined_call_operand.vmem [shape: f32[16,128], index: 3, kind: output, shape index: {}]
  %s4 = sld [smem:[#allocation0]]
  $region45: #{bird_classifier_head.1} parent=0
    _
  %s6 = ssub.s32 1, %s4
  %s7 = scalar_select 0, %s6, %s4
  loop: start=0, step=1, limit=4
  $region2: #{bird_classifier_head.1} parent=0 // loop_pre_header
    _
  $region3: #{bird_classifier_head.1} parent=0 // loop_header
    %s9 = sphi 0, %s13
    %p10 = scmp.ge.s32.totalorder %s9, 4
    %s19 = sphi 0, %s21
    %s22 = sphi 0, %s19
    %s23 = sphi 0, %s22
    %s39 = sphi 0, %s23
    %s43 = sphi 0, %s43
    %s45 = sphi 0, %s43
    %s46 = sphi 0, %s45
    %s60 = sphi 0, %s46
    %s64 = sphi 0, %s64
    %s66 = sphi 0, %s64
    %s67 = sphi 0, %s66
    %s81 = sphi 0, %s67
    %s87 = sphi 0, %s89
    %s90 = sphi 0, %s87
    %s91 = sphi 0, %s90
    %s107 = sphi 0, %s91
  $region4: #{bird_classifier_head.1} parent=0 // loop_header_branch
    %12 = sbr.rel (%p10) target = $region8
  $region5: #{bird_classifier_head.1} parent=0 // loop_body
    %s14 = ssub.s32 %s9, 1
    %s15 = ssub.s32 %s9, 2
    %s16 = sadd.s32 %s9, 1
    %s17 = ssub.s32 %s9, %s16
    %p18 = scmp.eq.s32.totalorder %s17, 0
    %s20 = sadd.s32 %s19, 1
    %s21 = scalar_select %p18, %s19, %s20
    %p24 = pneg %p18
    %p25 = scmp.eq.s32.totalorder %s9, 1
    %p26 = por %p24, %p25
    %p27 = scmp.ne.s32.totalorder %s19, %s22
    %p28 = scmp.eq.s32.totalorder %s9, 0
    %p29 = por %p27, %p28
    %p30 = scmp.ne.s32.totalorder %s19, %s22
    %p31 = scmp.eq.s32.totalorder %s14, 1
    %p32 = por %p30, %p31
    %p33 = scmp.ne.s32.totalorder %s22, %s23
    %p34 = scmp.eq.s32.totalorder %s14, 0
    %p35 = por %p33, %p34
    %p36 = scmp.ne.s32.totalorder %s22, %s23
    %p37 = scmp.eq.s32.totalorder %s15, 1
    %p38 = por %p36, %p37
    %p40 = scmp.ne.s32.totalorder %s23, %s39
    %p41 = scmp.eq.s32.totalorder %s15, 0
    %p42 = por %p40, %p41
    %s44 = sadd.s32 %s43, 1
    %p47 = scmp.eq.s32.totalorder %s9, 1
    %p48 = scmp.ne.s32.totalorder %s43, %s45
    %p49 = scmp.eq.s32.totalorder %s9, 0
    %p50 = por %p48, %p49
    %p51 = scmp.ne.s32.totalorder %s43, %s45
    %p52 = scmp.eq.s32.totalorder %s14, 1
    %p53 = por %p51, %p52
    %p54 = scmp.ne.s32.totalorder %s45, %s46
    %p55 = scmp.eq.s32.totalorder %s14, 0
    %p56 = por %p54, %p55
    %p57 = scmp.ne.s32.totalorder %s45, %s46
    %p58 = scmp.eq.s32.totalorder %s15, 1
    %p59 = por %p57, %p58
    %p61 = scmp.ne.s32.totalorder %s46, %s60
    %p62 = scmp.eq.s32.totalorder %s15, 0
    %p63 = por %p61, %p62
    %s65 = sadd.s32 %s64, 1
    %p68 = scmp.eq.s32.totalorder %s9, 1
    %p69 = scmp.ne.s32.totalorder %s64, %s66
    %p70 = scmp.eq.s32.totalorder %s9, 0
    %p71 = por %p69, %p70
    %p72 = scmp.ne.s32.totalorder %s64, %s66
    %p73 = scmp.eq.s32.totalorder %s14, 1
    %p74 = por %p72, %p73
    %p75 = scmp.ne.s32.totalorder %s66, %s67
    %p76 = scmp.eq.s32.totalorder %s14, 0
    %p77 = por %p75, %p76
    %p78 = scmp.ne.s32.totalorder %s66, %s67
    %p79 = scmp.eq.s32.totalorder %s15, 1
    %p80 = por %p78, %p79
    %p82 = scmp.ne.s32.totalorder %s67, %s81
    %p83 = scmp.eq.s32.totalorder %s15, 0
    %p84 = por %p82, %p83
    %s85 = ssub.s32 %s9, %s16
    %p86 = scmp.eq.s32.totalorder %s85, 0
    %s88 = sadd.s32 %s87, 1
    %s89 = scalar_select %p86, %s87, %s88
    %p92 = pneg %p86
    %p93 = scmp.eq.s32.totalorder %s9, 1
    %p94 = por %p92, %p93
    %p95 = scmp.ne.s32.totalorder %s87, %s90
    %p96 = scmp.eq.s32.totalorder %s9, 0
    %p97 = por %p95, %p96
    %p98 = scmp.ne.s32.totalorder %s87, %s90
    %p99 = scmp.eq.s32.totalorder %s14, 1
    %p100 = por %p98, %p99
    %p101 = scmp.ne.s32.totalorder %s90, %s91
    %p102 = scmp.eq.s32.totalorder %s14, 0
    %p103 = por %p101, %p102
    %p104 = scmp.ne.s32.totalorder %s90, %s91
    %p105 = scmp.eq.s32.totalorder %s15, 1
    %p106 = por %p104, %p105
    %p108 = scmp.ne.s32.totalorder %s91, %s107
    %p109 = scmp.eq.s32.totalorder %s15, 0
    %p110 = por %p108, %p109
    %p111 = scmp.le.s32.totalorder 1, %s9
    %p112 = scmp.lt.s32.totalorder %s9, 3
    %p113 = pnand %p111, %p112
    %p114 = pneg %p113
    // Predicated region
    $region9: #{bird_classifier_head.1} parent=5 // pred_check
      _
    $region10: #{bird_classifier_head.1} parent=5 // pred_check_branch
      %116 = sbr.rel (%p113) target = $region12
    $region11: #{bird_classifier_head.1} parent=5 // pred_region
      %s117 = ssub.s32 %s9, 1
      // Predicated region
      $region13: #{bird_classifier_head.1} parent=11 // pred_check
        %p118 = pneg %p56
      $region14: #{bird_classifier_head.1} parent=11 // pred_check_branch
        %120 = sbr.rel (%p118) target = $region16
      $region15: #{bird_classifier_head.1} parent=11 // pred_region
        _
      $region16: #{bird_classifier_head.1} parent=11 // pred_fallthru
        _
      // Predicated region
      $region17: #{bird_classifier_head.1} parent=11 // pred_check
        %p121 = pneg %p77
      $region18: #{bird_classifier_head.1} parent=11 // pred_check_branch
        %123 = sbr.rel (%p121) target = $region20
      $region19: #{bird_classifier_head.1} parent=11 // pred_region
        _
      $region20: #{bird_classifier_head.1} parent=11 // pred_fallthru
        _
    $region12: #{bird_classifier_head.1} parent=5 // pred_fallthru
      _
    %p124 = scmp.lt.s32.totalorder %s9, 2
    // Predicated region
    $region21: #{bird_classifier_head.1} parent=5 // pred_check
      %p125 = pneg %p124
    $region22: #{bird_classifier_head.1} parent=5 // pred_check_branch
      %127 = sbr.rel (%p125) target = $region24
    $region23: #{bird_classifier_head.1} parent=5 // pred_region
      // Predicated region
      $region25: #{bird_classifier_head.1} parent=23 // pred_check
        %p128 = pneg %p29
      $region26: #{bird_classifier_head.1} parent=23 // pred_check_branch
        %130 = sbr.rel (%p128) target = $region28
      $region27: #{bird_classifier_head.1} parent=23 // pred_region
        %s131 = smul.u32 8, %s9
        %p132 = scmp.lt.s32.totalorder %s131, 15
        %s133 = scalar_select %p132, %s131, 15
        %s134 = smul.addr %s133, 24
        %s135 = smul.addr %s134, 4
        %s136 = scalar_lea.vmem %s0, %s135
        %s137 = smul.u32 8, %s9
      $region28: #{bird_classifier_head.1} parent=23 // pred_fallthru
        _
    $region24: #{bird_classifier_head.1} parent=5 // pred_fallthru
      _
    %p138 = scmp.le.s32.totalorder 1, %s9
    %p139 = scmp.lt.s32.totalorder %s9, 3
    %p140 = pnand %p138, %p139
    %p141 = pneg %p140
    // Predicated region
    $region29: #{bird_classifier_head.1} parent=5 // pred_check
      _
    $region30: #{bird_classifier_head.1} parent=5 // pred_check_branch
      %143 = sbr.rel (%p140) target = $region32
    $region31: #{bird_classifier_head.1} parent=5 // pred_region
      %s144 = ssub.s32 %s9, 1
      %s145 = smul.u32 8, %s14
      %p146 = scmp.lt.s32.totalorder %s145, 15
      %s147 = scalar_select %p146, %s145, 15
      %s148 = smul.addr %s147, 24
      %s149 = smul.addr %s148, 4
      %s150 = scalar_lea.vmem %s0, %s149
      %p151 = pneg %p35
      %p152 = pneg %p32
      %p153 = pneg %p56
      %p154 = pneg %p53
      %p155 = pneg %p77
      %p156 = pneg %p74
      %p157 = pneg %p103
      %p158 = pneg %p100
      %p159 = scmp.lt.s32.totalorder %s14, 1
      %s160 = scalar_select %p159, %s14, 1
      %s161 = smul.addr %s160, 8
      %s162 = scalar_lea.vmem %s3, %s161
      %s163 = smul.u32 8, %s14
      %p164 = scmp.lt.s32.totalorder %s163, 15
      %s165 = scalar_select %p164, %s163, 15
      %s166 = smul.addr %s165, 24
      %s167 = smul.addr %s166, 4
      %s168 = scalar_lea.vmem %s0, %s167
      %s169 = smul.u32 8, %s14
      %p170 = scmp.lt.s32.totalorder %s14, 1
      %s171 = scalar_select %p170, %s14, 1
      %s172 = smul.addr %s171, 8
      %s173 = scalar_lea.vmem %s3, %s172
      %v175 = vld [vmem:[%s168] sm:$0xff]
      %v176 = vld [vmem:[%s168 + $0x8] sm:$0xff]
      %v177 = vld [vmem:[%s168 + $0x10] sm:$0xff]
      %v178 = vld [vmem:[%s168 + $0x18] sm:$0xff]
      %v179 = vld [vmem:[%s168 + $0x20] sm:$0xff]
      %v180 = vld [vmem:[%s168 + $0x28] sm:$0xff]
      %v181 = vld [vmem:[%s168 + $0x30] sm:$0xff]
      %v182 = vld [vmem:[%s168 + $0x38] sm:$0xff]
      %v183 = vld [vmem:[%s168 + $0x40] sm:$0xff]
      %v184 = vld [vmem:[%s168 + $0x48] sm:$0xff]
      %v185 = vld [vmem:[%s168 + $0x50] sm:$0xff]
      %v186 = vld [vmem:[%s168 + $0x58] sm:$0xff]
      %v187 = vld [vmem:[%s168 + $0x60] sm:$0xff]
      %v188 = vld [vmem:[%s168 + $0x68] sm:$0xff]
      %v189 = vld [vmem:[%s168 + $0x70] sm:$0xff]
      %v190 = vld [vmem:[%s168 + $0x78] sm:$0xff]
      %v191 = vld [vmem:[%s168 + $0x80] sm:$0xff]
      %v192 = vld [vmem:[%s168 + $0x88] sm:$0xff]
      %v193 = vld [vmem:[%s168 + $0x90] sm:$0xff]
      %v194 = vld [vmem:[%s168 + $0x98] sm:$0xff]
      %v195 = vld [vmem:[%s168 + $0xa0] sm:$0xff]
      %v196 = vld [vmem:[%s168 + $0xa8] sm:$0xff]
      %v197 = vld [vmem:[%s168 + $0xb0] sm:$0xff]
      %v198 = vld [vmem:[%s168 + $0xb8] sm:$0xff]
      %v199 = vld [vmem:[%s168 + $0xc0] sm:$0xff]
      %v200 = vld [vmem:[%s168 + $0xc8] sm:$0xff]
      %v201 = vld [vmem:[%s168 + $0xd0] sm:$0xff]
      %v202 = vld [vmem:[%s168 + $0xd8] sm:$0xff]
      %v203 = vld [vmem:[%s168 + $0xe0] sm:$0xff]
      %v204 = vld [vmem:[%s168 + $0xe8] sm:$0xff]
      %v205 = vld [vmem:[%s168 + $0xf0] sm:$0xff]
      %v206 = vld [vmem:[%s168 + $0xf8] sm:$0xff]
      %v207 = vld [vmem:[%s168 + $0x100] sm:$0xff]
      %v208 = vld [vmem:[%s168 + $0x108] sm:$0xff]
      %v209 = vld [vmem:[%s168 + $0x110] sm:$0xff]
      %v210 = vld [vmem:[%s168 + $0x118] sm:$0xff]
      %v211 = vld [vmem:[%s168 + $0x120] sm:$0xff]
      %v212 = vld [vmem:[%s168 + $0x128] sm:$0xff]
      %v213 = vld [vmem:[%s168 + $0x130] sm:$0xff]
      %v214 = vld [vmem:[%s168 + $0x138] sm:$0xff]
      %v215 = vld [vmem:[%s168 + $0x140] sm:$0xff]
      %v216 = vld [vmem:[%s168 + $0x148] sm:$0xff]
      %v217 = vld [vmem:[%s168 + $0x150] sm:$0xff]
      %v218 = vld [vmem:[%s168 + $0x158] sm:$0xff]
      %v219 = vld [vmem:[%s168 + $0x160] sm:$0xff]
      %v220 = vld [vmem:[%s168 + $0x168] sm:$0xff]
      %v221 = vld [vmem:[%s168 + $0x170] sm:$0xff]
      %v222 = vld [vmem:[%s168 + $0x178] sm:$0xff]
      %v223 = vld [vmem:[%s168 + $0x180] sm:$0xff]
      %v224 = vld [vmem:[%s168 + $0x188] sm:$0xff]
      %v225 = vld [vmem:[%s168 + $0x190] sm:$0xff]
      %v226 = vld [vmem:[%s168 + $0x198] sm:$0xff]
      %v227 = vld [vmem:[%s168 + $0x1a0] sm:$0xff]
      %v228 = vld [vmem:[%s168 + $0x1a8] sm:$0xff]
      %v229 = vld [vmem:[%s168 + $0x1b0] sm:$0xff]
      %v230 = vld [vmem:[%s168 + $0x1b8] sm:$0xff]
      %v231 = vld [vmem:[%s168 + $0x1c0] sm:$0xff]
      %v232 = vld [vmem:[%s168 + $0x1c8] sm:$0xff]
      %v233 = vld [vmem:[%s168 + $0x1d0] sm:$0xff]
      %v234 = vld [vmem:[%s168 + $0x1d8] sm:$0xff]
      %v235 = vld [vmem:[%s168 + $0x1e0] sm:$0xff]
      %v236 = vld [vmem:[%s168 + $0x1e8] sm:$0xff]
      %v237 = vld [vmem:[%s168 + $0x1f0] sm:$0xff]
      %v238 = vld [vmem:[%s168 + $0x1f8] sm:$0xff]
      %v239 = vld [vmem:[%s168 + $0x200] sm:$0xff]
      %v240 = vld [vmem:[%s168 + $0x208] sm:$0xff]
      %v241 = vld [vmem:[%s168 + $0x210] sm:$0xff]
      %v242 = vld [vmem:[%s168 + $0x218] sm:$0xff]
      %v243 = vld [vmem:[%s168 + $0x220] sm:$0xff]
      %v244 = vld [vmem:[%s168 + $0x228] sm:$0xff]
      %v245 = vld [vmem:[%s168 + $0x230] sm:$0xff]
      %v246 = vld [vmem:[%s168 + $0x238] sm:$0xff]
      %v247 = vld [vmem:[%s168 + $0x240] sm:$0xff]
      %v248 = vld [vmem:[%s168 + $0x248] sm:$0xff]
      %v249 = vld [vmem:[%s168 + $0x250] sm:$0xff]
      %v250 = vld [vmem:[%s168 + $0x258] sm:$0xff]
      %v251 = vld [vmem:[%s168 + $0x260] sm:$0xff]
      %v252 = vld [vmem:[%s168 + $0x268] sm:$0xff]
      %v253 = vld [vmem:[%s168 + $0x270] sm:$0xff]
      %v254 = vld [vmem:[%s168 + $0x278] sm:$0xff]
      %v255 = vld [vmem:[%s168 + $0x280] sm:$0xff]
      %v256 = vld [vmem:[%s168 + $0x288] sm:$0xff]
      %v257 = vld [vmem:[%s168 + $0x290] sm:$0xff]
      %v258 = vld [vmem:[%s168 + $0x298] sm:$0xff]
      %v259 = vld [vmem:[%s168 + $0x2a0] sm:$0xff]
      %v260 = vld [vmem:[%s168 + $0x2a8] sm:$0xff]
      %v261 = vld [vmem:[%s168 + $0x2b0] sm:$0xff]
      %v262 = vld [vmem:[%s168 + $0x2b8] sm:$0xff]
      %v263 = vld [vmem:[%s168 + $0x2c0] sm:$0xff]
      %v264 = vld [vmem:[%s168 + $0x2c8] sm:$0xff]
      %v265 = vld [vmem:[%s168 + $0x2d0] sm:$0xff]
      %v266 = vld [vmem:[%s168 + $0x2d8] sm:$0xff]
      %v267 = vld [vmem:[%s168 + $0x2e0] sm:$0xff]
      %v268 = vld [vmem:[%s168 + $0x2e8] sm:$0xff]
      %v269 = vld [vmem:[%s168 + $0x2f0] sm:$0xff]
      %v270 = vld [vmem:[%s168 + $0x2f8] sm:$0xff]
      %v271 = vld [vmem:[%s1] sm:$0xf]
      %v272 = vld [vmem:[%s1 + $0x4] sm:$0xf]
      %v273 = vld [vmem:[%s1 + $0x8] sm:$0xf]
      %v274 = vld [vmem:[%s1 + $0xc] sm:$0xf]
      %v275 = vld [vmem:[%s1 + $0x10] sm:$0xf]
      %v276 = vld [vmem:[%s1 + $0x14] sm:$0xf]
      %v277 = vld [vmem:[%s1 + $0x18] sm:$0xf]
      %v278 = vld [vmem:[%s1 + $0x1c] sm:$0xf]
      %v279 = vld [vmem:[%s1 + $0x20] sm:$0xf]
      %v280 = vld [vmem:[%s1 + $0x24] sm:$0xf]
      %v281 = vld [vmem:[%s1 + $0x28] sm:$0xf]
      %v282 = vld [vmem:[%s1 + $0x2c] sm:$0xf]
      %v283 = vld [vmem:[%s1 + $0x30] sm:$0xf]
      %v284 = vld [vmem:[%s1 + $0x34] sm:$0xf]
      %v285 = vld [vmem:[%s1 + $0x38] sm:$0xf]
      %v286 = vld [vmem:[%s1 + $0x3c] sm:$0xf]
      %v287 = vld [vmem:[%s1 + $0x40] sm:$0xf]
      %v288 = vld [vmem:[%s1 + $0x44] sm:$0xf]
      %v289 = vld [vmem:[%s1 + $0x48] sm:$0xf]
      %v290 = vld [vmem:[%s1 + $0x4c] sm:$0xf]
      %v291 = vld [vmem:[%s1 + $0x50] sm:$0xf]
      %v292 = vld [vmem:[%s1 + $0x54] sm:$0xf]
      %v293 = vld [vmem:[%s1 + $0x58] sm:$0xf]
      %v294 = vld [vmem:[%s1 + $0x5c] sm:$0xf]
      %v295 = vld [vmem:[%s1 + $0x60] sm:$0xf]
      %v296 = vld [vmem:[%s1 + $0x64] sm:$0xf]
      %v297 = vld [vmem:[%s1 + $0x68] sm:$0xf]
      %v298 = vld [vmem:[%s1 + $0x6c] sm:$0xf]
      %v299 = vld [vmem:[%s1 + $0x70] sm:$0xf]
      %v300 = vld [vmem:[%s1 + $0x74] sm:$0xf]
      %v301 = vld [vmem:[%s1 + $0x78] sm:$0xf]
      %v302 = vld [vmem:[%s1 + $0x7c] sm:$0xf]
      %v303 = vld [vmem:[%s1 + $0x80] sm:$0xf]
      %v304 = vld [vmem:[%s1 + $0x84] sm:$0xf]
      %v305 = vld [vmem:[%s1 + $0x88] sm:$0xf]
      %v306 = vld [vmem:[%s1 + $0x8c] sm:$0xf]
      %v307 = vld [vmem:[%s1 + $0x90] sm:$0xf]
      %v308 = vld [vmem:[%s1 + $0x94] sm:$0xf]
      %v309 = vld [vmem:[%s1 + $0x98] sm:$0xf]
      %v310 = vld [vmem:[%s1 + $0x9c] sm:$0xf]
      %v311 = vld [vmem:[%s1 + $0xa0] sm:$0xf]
      %v312 = vld [vmem:[%s1 + $0xa4] sm:$0xf]
      %v313 = vld [vmem:[%s1 + $0xa8] sm:$0xf]
      %v314 = vld [vmem:[%s1 + $0xac] sm:$0xf]
      %v315 = vld [vmem:[%s1 + $0xb0] sm:$0xf]
      %v316 = vld [vmem:[%s1 + $0xb4] sm:$0xf]
      %v317 = vld [vmem:[%s1 + $0xb8] sm:$0xf]
      %v318 = vld [vmem:[%s1 + $0xbc] sm:$0xf]
      %v319 = vld [vmem:[%s1 + $0xc0] sm:$0xf]
      %v320 = vld [vmem:[%s1 + $0xc4] sm:$0xf]
      %v321 = vld [vmem:[%s1 + $0xc8] sm:$0xf]
      %v322 = vld [vmem:[%s1 + $0xcc] sm:$0xf]
      %v323 = vld [vmem:[%s1 + $0xd0] sm:$0xf]
      %v324 = vld [vmem:[%s1 + $0xd4] sm:$0xf]
      %v325 = vld [vmem:[%s1 + $0xd8] sm:$0xf]
      %v326 = vld [vmem:[%s1 + $0xdc] sm:$0xf]
      %v327 = vld [vmem:[%s1 + $0xe0] sm:$0xf]
      %v328 = vld [vmem:[%s1 + $0xe4] sm:$0xf]
      %v329 = vld [vmem:[%s1 + $0xe8] sm:$0xf]
      %v330 = vld [vmem:[%s1 + $0xec] sm:$0xf]
      %v331 = vld [vmem:[%s1 + $0xf0] sm:$0xf]
      %v332 = vld [vmem:[%s1 + $0xf4] sm:$0xf]
      %v333 = vld [vmem:[%s1 + $0xf8] sm:$0xf]
      %v334 = vld [vmem:[%s1 + $0xfc] sm:$0xf]
      %v335 = vld [vmem:[%s1 + $0x100] sm:$0xf]
      %v336 = vld [vmem:[%s1 + $0x104] sm:$0xf]
      %v337 = vld [vmem:[%s1 + $0x108] sm:$0xf]
      %v338 = vld [vmem:[%s1 + $0x10c] sm:$0xf]
      %v339 = vld [vmem:[%s1 + $0x110] sm:$0xf]
      %v340 = vld [vmem:[%s1 + $0x114] sm:$0xf]
      %v341 = vld [vmem:[%s1 + $0x118] sm:$0xf]
      %v342 = vld [vmem:[%s1 + $0x11c] sm:$0xf]
      %v343 = vld [vmem:[%s1 + $0x120] sm:$0xf]
      %v344 = vld [vmem:[%s1 + $0x124] sm:$0xf]
      %v345 = vld [vmem:[%s1 + $0x128] sm:$0xf]
      %v346 = vld [vmem:[%s1 + $0x12c] sm:$0xf]
      %v347 = vld [vmem:[%s1 + $0x130] sm:$0xf]
      %v348 = vld [vmem:[%s1 + $0x134] sm:$0xf]
      %v349 = vld [vmem:[%s1 + $0x138] sm:$0xf]
      %v350 = vld [vmem:[%s1 + $0x13c] sm:$0xf]
      %v351 = vld [vmem:[%s1 + $0x140] sm:$0xf]
      %v352 = vld [vmem:[%s1 + $0x144] sm:$0xf]
      %v353 = vld [vmem:[%s1 + $0x148] sm:$0xf]
      %v354 = vld [vmem:[%s1 + $0x14c] sm:$0xf]
      %v355 = vld [vmem:[%s1 + $0x150] sm:$0xf]
      %v356 = vld [vmem:[%s1 + $0x154] sm:$0xf]
      %v357 = vld [vmem:[%s1 + $0x158] sm:$0xf]
      %v358 = vld [vmem:[%s1 + $0x15c] sm:$0xf]
      %v359 = vld [vmem:[%s1 + $0x160] sm:$0xf]
      %v360 = vld [vmem:[%s1 + $0x164] sm:$0xf]
      %v361 = vld [vmem:[%s1 + $0x168] sm:$0xf]
      %v362 = vld [vmem:[%s1 + $0x16c] sm:$0xf]
      %v363 = vld [vmem:[%s1 + $0x170] sm:$0xf]
      %v364 = vld [vmem:[%s1 + $0x174] sm:$0xf]
      %v365 = vld [vmem:[%s1 + $0x178] sm:$0xf]
      %v366 = vld [vmem:[%s1 + $0x17c] sm:$0xf]
      %v367 = vld [vmem:[%s1 + $0x180] sm:$0xf]
      %v368 = vld [vmem:[%s1 + $0x184] sm:$0xf]
      %v369 = vld [vmem:[%s1 + $0x188] sm:$0xf]
      %v370 = vld [vmem:[%s1 + $0x18c] sm:$0xf]
      %v371 = vld [vmem:[%s1 + $0x190] sm:$0xf]
      %v372 = vld [vmem:[%s1 + $0x194] sm:$0xf]
      %v373 = vld [vmem:[%s1 + $0x198] sm:$0xf]
      %v374 = vld [vmem:[%s1 + $0x19c] sm:$0xf]
      %v375 = vld [vmem:[%s1 + $0x1a0] sm:$0xf]
      %v376 = vld [vmem:[%s1 + $0x1a4] sm:$0xf]
      %v377 = vld [vmem:[%s1 + $0x1a8] sm:$0xf]
      %v378 = vld [vmem:[%s1 + $0x1ac] sm:$0xf]
      %v379 = vld [vmem:[%s1 + $0x1b0] sm:$0xf]
      %v380 = vld [vmem:[%s1 + $0x1b4] sm:$0xf]
      %v381 = vld [vmem:[%s1 + $0x1b8] sm:$0xf]
      %v382 = vld [vmem:[%s1 + $0x1bc] sm:$0xf]
      %v383 = vld [vmem:[%s1 + $0x1c0] sm:$0xf]
      %v384 = vld [vmem:[%s1 + $0x1c4] sm:$0xf]
      %v385 = vld [vmem:[%s1 + $0x1c8] sm:$0xf]
      %v386 = vld [vmem:[%s1 + $0x1cc] sm:$0xf]
      %v387 = vld [vmem:[%s1 + $0x1d0] sm:$0xf]
      %v388 = vld [vmem:[%s1 + $0x1d4] sm:$0xf]
      %v389 = vld [vmem:[%s1 + $0x1d8] sm:$0xf]
      %v390 = vld [vmem:[%s1 + $0x1dc] sm:$0xf]
      %v391 = vld [vmem:[%s1 + $0x1e0] sm:$0xf]
      %v392 = vld [vmem:[%s1 + $0x1e4] sm:$0xf]
      %v393 = vld [vmem:[%s1 + $0x1e8] sm:$0xf]
      %v394 = vld [vmem:[%s1 + $0x1ec] sm:$0xf]
      %v395 = vld [vmem:[%s1 + $0x1f0] sm:$0xf]
      %v396 = vld [vmem:[%s1 + $0x1f4] sm:$0xf]
      %v397 = vld [vmem:[%s1 + $0x1f8] sm:$0xf]
      %v398 = vld [vmem:[%s1 + $0x1fc] sm:$0xf]
      %v399 = vld [vmem:[%s1 + $0x200] sm:$0xf]
      %v400 = vld [vmem:[%s1 + $0x204] sm:$0xf]
      %v401 = vld [vmem:[%s1 + $0x208] sm:$0xf]
      %v402 = vld [vmem:[%s1 + $0x20c] sm:$0xf]
      %v403 = vld [vmem:[%s1 + $0x210] sm:$0xf]
      %v404 = vld [vmem:[%s1 + $0x214] sm:$0xf]
      %v405 = vld [vmem:[%s1 + $0x218] sm:$0xf]
      %v406 = vld [vmem:[%s1 + $0x21c] sm:$0xf]
      %v407 = vld [vmem:[%s1 + $0x220] sm:$0xf]
      %v408 = vld [vmem:[%s1 + $0x224] sm:$0xf]
      %v409 = vld [vmem:[%s1 + $0x228] sm:$0xf]
      %v410 = vld [vmem:[%s1 + $0x22c] sm:$0xf]
      %v411 = vld [vmem:[%s1 + $0x230] sm:$0xf]
      %v412 = vld [vmem:[%s1 + $0x234] sm:$0xf]
      %v413 = vld [vmem:[%s1 + $0x238] sm:$0xf]
      %v414 = vld [vmem:[%s1 + $0x23c] sm:$0xf]
      %v415 = vld [vmem:[%s1 + $0x240] sm:$0xf]
      %v416 = vld [vmem:[%s1 + $0x244] sm:$0xf]
      %v417 = vld [vmem:[%s1 + $0x248] sm:$0xf]
      %v418 = vld [vmem:[%s1 + $0x24c] sm:$0xf]
      %v419 = vld [vmem:[%s1 + $0x250] sm:$0xf]
      %v420 = vld [vmem:[%s1 + $0x254] sm:$0xf]
      %v421 = vld [vmem:[%s1 + $0x258] sm:$0xf]
      %v422 = vld [vmem:[%s1 + $0x25c] sm:$0xf]
      %v423 = vld [vmem:[%s1 + $0x260] sm:$0xf]
      %v424 = vld [vmem:[%s1 + $0x264] sm:$0xf]
      %v425 = vld [vmem:[%s1 + $0x268] sm:$0xf]
      %v426 = vld [vmem:[%s1 + $0x26c] sm:$0xf]
      %v427 = vld [vmem:[%s1 + $0x270] sm:$0xf]
      %v428 = vld [vmem:[%s1 + $0x274] sm:$0xf]
      %v429 = vld [vmem:[%s1 + $0x278] sm:$0xf]
      %v430 = vld [vmem:[%s1 + $0x27c] sm:$0xf]
      %v431 = vld [vmem:[%s1 + $0x280] sm:$0xf]
      %v432 = vld [vmem:[%s1 + $0x284] sm:$0xf]
      %v433 = vld [vmem:[%s1 + $0x288] sm:$0xf]
      %v434 = vld [vmem:[%s1 + $0x28c] sm:$0xf]
      %v435 = vld [vmem:[%s1 + $0x290] sm:$0xf]
      %v436 = vld [vmem:[%s1 + $0x294] sm:$0xf]
      %v437 = vld [vmem:[%s1 + $0x298] sm:$0xf]
      %v438 = vld [vmem:[%s1 + $0x29c] sm:$0xf]
      %v439 = vld [vmem:[%s1 + $0x2a0] sm:$0xf]
      %v440 = vld [vmem:[%s1 + $0x2a4] sm:$0xf]
      %v441 = vld [vmem:[%s1 + $0x2a8] sm:$0xf]
      %v442 = vld [vmem:[%s1 + $0x2ac] sm:$0xf]
      %v443 = vld [vmem:[%s1 + $0x2b0] sm:$0xf]
      %v444 = vld [vmem:[%s1 + $0x2b4] sm:$0xf]
      %v445 = vld [vmem:[%s1 + $0x2b8] sm:$0xf]
      %v446 = vld [vmem:[%s1 + $0x2bc] sm:$0xf]
      %v447 = vld [vmem:[%s1 + $0x2c0] sm:$0xf]
      %v448 = vld [vmem:[%s1 + $0x2c4] sm:$0xf]
      %v449 = vld [vmem:[%s1 + $0x2c8] sm:$0xf]
      %v450 = vld [vmem:[%s1 + $0x2cc] sm:$0xf]
      %v451 = vld [vmem:[%s1 + $0x2d0] sm:$0xf]
      %v452 = vld [vmem:[%s1 + $0x2d4] sm:$0xf]
      %v453 = vld [vmem:[%s1 + $0x2d8] sm:$0xf]
      %v454 = vld [vmem:[%s1 + $0x2dc] sm:$0xf]
      %v455 = vld [vmem:[%s1 + $0x2e0] sm:$0xf]
      %v456 = vld [vmem:[%s1 + $0x2e4] sm:$0xf]
      %v457 = vld [vmem:[%s1 + $0x2e8] sm:$0xf]
      %v458 = vld [vmem:[%s1 + $0x2ec] sm:$0xf]
      %v459 = vld [vmem:[%s1 + $0x2f0] sm:$0xf]
      %v460 = vld [vmem:[%s1 + $0x2f4] sm:$0xf]
      %v461 = vld [vmem:[%s1 + $0x2f8] sm:$0xf]
      %v462 = vld [vmem:[%s1 + $0x2fc] sm:$0xf]
      %v559 = vunpack.c.l.b16 %v175
      %v560 = vunpack.c.h.b16 %v175
      %v561 = vunpack.c.l.b16 %v176
      %v562 = vunpack.c.h.b16 %v176
      %v563 = vunpack.c.l.b16 %v177
      %v564 = vunpack.c.h.b16 %v177
      %v565 = vunpack.c.l.b16 %v178
      %v566 = vunpack.c.h.b16 %v178
      %v567 = vunpack.c.l.b16 %v179
      %v568 = vunpack.c.h.b16 %v179
      %v569 = vunpack.c.l.b16 %v180
      %v570 = vunpack.c.h.b16 %v180
      %v571 = vunpack.c.l.b16 %v181
      %v572 = vunpack.c.h.b16 %v181
      %v573 = vunpack.c.l.b16 %v182
      %v574 = vunpack.c.h.b16 %v182
      %v575 = vunpack.c.l.b16 %v183
      %v576 = vunpack.c.h.b16 %v183
      %v577 = vunpack.c.l.b16 %v184
      %v578 = vunpack.c.h.b16 %v184
      %v579 = vunpack.c.l.b16 %v185
      %v580 = vunpack.c.h.b16 %v185
      %v581 = vunpack.c.l.b16 %v186
      %v582 = vunpack.c.h.b16 %v186
      %v583 = vunpack.c.l.b16 %v187
      %v584 = vunpack.c.h.b16 %v187
      %v585 = vunpack.c.l.b16 %v188
      %v586 = vunpack.c.h.b16 %v188
      %v587 = vunpack.c.l.b16 %v189
      %v588 = vunpack.c.h.b16 %v189
      %v589 = vunpack.c.l.b16 %v190
      %v590 = vunpack.c.h.b16 %v190
      %v591 = vunpack.c.l.b16 %v191
      %v592 = vunpack.c.h.b16 %v191
      %v593 = vunpack.c.l.b16 %v192
      %v594 = vunpack.c.h.b16 %v192
      %v595 = vunpack.c.l.b16 %v193
      %v596 = vunpack.c.h.b16 %v193
      %v597 = vunpack.c.l.b16 %v194
      %v598 = vunpack.c.h.b16 %v194
      %v599 = vunpack.c.l.b16 %v195
      %v600 = vunpack.c.h.b16 %v195
      %v601 = vunpack.c.l.b16 %v196
      %v602 = vunpack.c.h.b16 %v196
      %v603 = vunpack.c.l.b16 %v197
      %v604 = vunpack.c.h.b16 %v197
      %v605 = vunpack.c.l.b16 %v198
      %v606 = vunpack.c.h.b16 %v198
      %v607 = vunpack.c.l.b16 %v199
      %v608 = vunpack.c.h.b16 %v199
      %v609 = vunpack.c.l.b16 %v200
      %v610 = vunpack.c.h.b16 %v200
      %v611 = vunpack.c.l.b16 %v201
      %v612 = vunpack.c.h.b16 %v201
      %v613 = vunpack.c.l.b16 %v202
      %v614 = vunpack.c.h.b16 %v202
      %v615 = vunpack.c.l.b16 %v203
      %v616 = vunpack.c.h.b16 %v203
      %v617 = vunpack.c.l.b16 %v204
      %v618 = vunpack.c.h.b16 %v204
      %v619 = vunpack.c.l.b16 %v205
      %v620 = vunpack.c.h.b16 %v205
      %v621 = vunpack.c.l.b16 %v206
      %v622 = vunpack.c.h.b16 %v206
      %v623 = vunpack.c.l.b16 %v207
      %v624 = vunpack.c.h.b16 %v207
      %v625 = vunpack.c.l.b16 %v208
      %v626 = vunpack.c.h.b16 %v208
      %v627 = vunpack.c.l.b16 %v209
      %v628 = vunpack.c.h.b16 %v209
      %v629 = vunpack.c.l.b16 %v210
      %v630 = vunpack.c.h.b16 %v210
      %v631 = vunpack.c.l.b16 %v211
      %v632 = vunpack.c.h.b16 %v211
      %v633 = vunpack.c.l.b16 %v212
      %v634 = vunpack.c.h.b16 %v212
      %v635 = vunpack.c.l.b16 %v213
      %v636 = vunpack.c.h.b16 %v213
      %v637 = vunpack.c.l.b16 %v214
      %v638 = vunpack.c.h.b16 %v214
      %v639 = vunpack.c.l.b16 %v215
      %v640 = vunpack.c.h.b16 %v215
      %v641 = vunpack.c.l.b16 %v216
      %v642 = vunpack.c.h.b16 %v216
      %v643 = vunpack.c.l.b16 %v217
      %v644 = vunpack.c.h.b16 %v217
      %v645 = vunpack.c.l.b16 %v218
      %v646 = vunpack.c.h.b16 %v218
      %v647 = vunpack.c.l.b16 %v219
      %v648 = vunpack.c.h.b16 %v219
      %v649 = vunpack.c.l.b16 %v220
      %v650 = vunpack.c.h.b16 %v220
      %v651 = vunpack.c.l.b16 %v221
      %v652 = vunpack.c.h.b16 %v221
      %v653 = vunpack.c.l.b16 %v222
      %v654 = vunpack.c.h.b16 %v222
      %v655 = vunpack.c.l.b16 %v223
      %v656 = vunpack.c.h.b16 %v223
      %v657 = vunpack.c.l.b16 %v224
      %v658 = vunpack.c.h.b16 %v224
      %v659 = vunpack.c.l.b16 %v225
      %v660 = vunpack.c.h.b16 %v225
      %v661 = vunpack.c.l.b16 %v226
      %v662 = vunpack.c.h.b16 %v226
      %v663 = vunpack.c.l.b16 %v227
      %v664 = vunpack.c.h.b16 %v227
      %v665 = vunpack.c.l.b16 %v228
      %v666 = vunpack.c.h.b16 %v228
      %v667 = vunpack.c.l.b16 %v229
      %v668 = vunpack.c.h.b16 %v229
      %v669 = vunpack.c.l.b16 %v230
      %v670 = vunpack.c.h.b16 %v230
      %v671 = vunpack.c.l.b16 %v231
      %v672 = vunpack.c.h.b16 %v231
      %v673 = vunpack.c.l.b16 %v232
      %v674 = vunpack.c.h.b16 %v232
      %v675 = vunpack.c.l.b16 %v233
      %v676 = vunpack.c.h.b16 %v233
      %v677 = vunpack.c.l.b16 %v234
      %v678 = vunpack.c.h.b16 %v234
      %v679 = vunpack.c.l.b16 %v235
      %v680 = vunpack.c.h.b16 %v235
      %v681 = vunpack.c.l.b16 %v236
      %v682 = vunpack.c.h.b16 %v236
      %v683 = vunpack.c.l.b16 %v237
      %v684 = vunpack.c.h.b16 %v237
      %v685 = vunpack.c.l.b16 %v238
      %v686 = vunpack.c.h.b16 %v238
      %v687 = vunpack.c.l.b16 %v239
      %v688 = vunpack.c.h.b16 %v239
      %v689 = vunpack.c.l.b16 %v240
      %v690 = vunpack.c.h.b16 %v240
      %v691 = vunpack.c.l.b16 %v241
      %v692 = vunpack.c.h.b16 %v241
      %v693 = vunpack.c.l.b16 %v242
      %v694 = vunpack.c.h.b16 %v242
      %v695 = vunpack.c.l.b16 %v243
      %v696 = vunpack.c.h.b16 %v243
      %v697 = vunpack.c.l.b16 %v244
      %v698 = vunpack.c.h.b16 %v244
      %v699 = vunpack.c.l.b16 %v245
      %v700 = vunpack.c.h.b16 %v245
      %v701 = vunpack.c.l.b16 %v246
      %v702 = vunpack.c.h.b16 %v246
      %v703 = vunpack.c.l.b16 %v247
      %v704 = vunpack.c.h.b16 %v247
      %v705 = vunpack.c.l.b16 %v248
      %v706 = vunpack.c.h.b16 %v248
      %v707 = vunpack.c.l.b16 %v249
      %v708 = vunpack.c.h.b16 %v249
      %v709 = vunpack.c.l.b16 %v250
      %v710 = vunpack.c.h.b16 %v250
      %v711 = vunpack.c.l.b16 %v251
      %v712 = vunpack.c.h.b16 %v251
      %v713 = vunpack.c.l.b16 %v252
      %v714 = vunpack.c.h.b16 %v252
      %v715 = vunpack.c.l.b16 %v253
      %v716 = vunpack.c.h.b16 %v253
      %v717 = vunpack.c.l.b16 %v254
      %v718 = vunpack.c.h.b16 %v254
      %v719 = vunpack.c.l.b16 %v255
      %v720 = vunpack.c.h.b16 %v255
      %v721 = vunpack.c.l.b16 %v256
      %v722 = vunpack.c.h.b16 %v256
      %v723 = vunpack.c.l.b16 %v257
      %v724 = vunpack.c.h.b16 %v257
      %v725 = vunpack.c.l.b16 %v258
      %v726 = vunpack.c.h.b16 %v258
      %v727 = vunpack.c.l.b16 %v259
      %v728 = vunpack.c.h.b16 %v259
      %v729 = vunpack.c.l.b16 %v260
      %v730 = vunpack.c.h.b16 %v260
      %v731 = vunpack.c.l.b16 %v261
      %v732 = vunpack.c.h.b16 %v261
      %v733 = vunpack.c.l.b16 %v262
      %v734 = vunpack.c.h.b16 %v262
      %v735 = vunpack.c.l.b16 %v263
      %v736 = vunpack.c.h.b16 %v263
      %v737 = vunpack.c.l.b16 %v264
      %v738 = vunpack.c.h.b16 %v264
      %v739 = vunpack.c.l.b16 %v265
      %v740 = vunpack.c.h.b16 %v265
      %v741 = vunpack.c.l.b16 %v266
      %v742 = vunpack.c.h.b16 %v266
      %v743 = vunpack.c.l.b16 %v267
      %v744 = vunpack.c.h.b16 %v267
      %v745 = vunpack.c.l.b16 %v268
      %v746 = vunpack.c.h.b16 %v268
      %v747 = vunpack.c.l.b16 %v269
      %v748 = vunpack.c.h.b16 %v269
      %v749 = vunpack.c.l.b16 %v270
      %v750 = vunpack.c.h.b16 %v270
      %v751 = vpack.c.b16 %v571, %v559
      %v752 = vpack.c.b16 %v572, %v560
      %v753 = vpack.c.b16 %v573, %v561
      %v754 = vpack.c.b16 %v574, %v562
      %v755 = vpack.c.b16 %v575, %v563
      %v756 = vpack.c.b16 %v576, %v564
      %v757 = vpack.c.b16 %v577, %v565
      %v758 = vpack.c.b16 %v578, %v566
      %v759 = vpack.c.b16 %v579, %v567
      %v760 = vpack.c.b16 %v580, %v568
      %v761 = vpack.c.b16 %v581, %v569
      %v762 = vpack.c.b16 %v582, %v570
      %v763 = vpack.c.b16 %v595, %v583
      %v764 = vpack.c.b16 %v596, %v584
      %v765 = vpack.c.b16 %v597, %v585
      %v766 = vpack.c.b16 %v598, %v586
      %v767 = vpack.c.b16 %v599, %v587
      %v768 = vpack.c.b16 %v600, %v588
      %v769 = vpack.c.b16 %v601, %v589
      %v770 = vpack.c.b16 %v602, %v590
      %v771 = vpack.c.b16 %v603, %v591
      %v772 = vpack.c.b16 %v604, %v592
      %v773 = vpack.c.b16 %v605, %v593
      %v774 = vpack.c.b16 %v606, %v594
      %v775 = vpack.c.b16 %v619, %v607
      %v776 = vpack.c.b16 %v620, %v608
      %v777 = vpack.c.b16 %v621, %v609
      %v778 = vpack.c.b16 %v622, %v610
      %v779 = vpack.c.b16 %v623, %v611
      %v780 = vpack.c.b16 %v624, %v612
      %v781 = vpack.c.b16 %v625, %v613
      %v782 = vpack.c.b16 %v626, %v614
      %v783 = vpack.c.b16 %v627, %v615
      %v784 = vpack.c.b16 %v628, %v616
      %v785 = vpack.c.b16 %v629, %v617
      %v786 = vpack.c.b16 %v630, %v618
      %v787 = vpack.c.b16 %v643, %v631
      %v788 = vpack.c.b16 %v644, %v632
      %v789 = vpack.c.b16 %v645, %v633
      %v790 = vpack.c.b16 %v646, %v634
      %v791 = vpack.c.b16 %v647, %v635
      %v792 = vpack.c.b16 %v648, %v636
      %v793 = vpack.c.b16 %v649, %v637
      %v794 = vpack.c.b16 %v650, %v638
      %v795 = vpack.c.b16 %v651, %v639
      %v796 = vpack.c.b16 %v652, %v640
      %v797 = vpack.c.b16 %v653, %v641
      %v798 = vpack.c.b16 %v654, %v642
      %v799 = vpack.c.b16 %v667, %v655
      %v800 = vpack.c.b16 %v668, %v656
      %v801 = vpack.c.b16 %v669, %v657
      %v802 = vpack.c.b16 %v670, %v658
      %v803 = vpack.c.b16 %v671, %v659
      %v804 = vpack.c.b16 %v672, %v660
      %v805 = vpack.c.b16 %v673, %v661
      %v806 = vpack.c.b16 %v674, %v662
      %v807 = vpack.c.b16 %v675, %v663
      %v808 = vpack.c.b16 %v676, %v664
      %v809 = vpack.c.b16 %v677, %v665
      %v810 = vpack.c.b16 %v678, %v666
      %v811 = vpack.c.b16 %v691, %v679
      %v812 = vpack.c.b16 %v692, %v680
      %v813 = vpack.c.b16 %v693, %v681
      %v814 = vpack.c.b16 %v694, %v682
      %v815 = vpack.c.b16 %v695, %v683
      %v816 = vpack.c.b16 %v696, %v684
      %v817 = vpack.c.b16 %v697, %v685
      %v818 = vpack.c.b16 %v698, %v686
      %v819 = vpack.c.b16 %v699, %v687
      %v820 = vpack.c.b16 %v700, %v688
      %v821 = vpack.c.b16 %v701, %v689
      %v822 = vpack.c.b16 %v702, %v690
      %v823 = vpack.c.b16 %v715, %v703
      %v824 = vpack.c.b16 %v716, %v704
      %v825 = vpack.c.b16 %v717, %v705
      %v826 = vpack.c.b16 %v718, %v706
      %v827 = vpack.c.b16 %v719, %v707
      %v828 = vpack.c.b16 %v720, %v708
      %v829 = vpack.c.b16 %v721, %v709
      %v830 = vpack.c.b16 %v722, %v710
      %v831 = vpack.c.b16 %v723, %v711
      %v832 = vpack.c.b16 %v724, %v712
      %v833 = vpack.c.b16 %v725, %v713
      %v834 = vpack.c.b16 %v726, %v714
      %v835 = vpack.c.b16 %v739, %v727
      %v836 = vpack.c.b16 %v740, %v728
      %v837 = vpack.c.b16 %v741, %v729
      %v838 = vpack.c.b16 %v742, %v730
      %v839 = vpack.c.b16 %v743, %v731
      %v840 = vpack.c.b16 %v744, %v732
      %v841 = vpack.c.b16 %v745, %v733
      %v842 = vpack.c.b16 %v746, %v734
      %v843 = vpack.c.b16 %v747, %v735
      %v844 = vpack.c.b16 %v748, %v736
      %v845 = vpack.c.b16 %v749, %v737
      %v846 = vpack.c.b16 %v750, %v738
      %v1135 = vunpack.c.l.b16 %v271
      %v1136 = vunpack.c.l.b16 %v272
      %v1137 = vunpack.c.l.b16 %v273
      %v1138 = vunpack.c.l.b16 %v274
      %v1139 = vunpack.c.l.b16 %v275
      %v1140 = vunpack.c.l.b16 %v276
      %v1141 = vunpack.c.l.b16 %v277
      %v1142 = vunpack.c.l.b16 %v278
      %v1143 = vunpack.c.l.b16 %v279
      %v1144 = vunpack.c.l.b16 %v280
      %v1145 = vunpack.c.l.b16 %v281
      %v1146 = vunpack.c.l.b16 %v282
      %v1147 = vunpack.c.l.b16 %v283
      %v1148 = vunpack.c.l.b16 %v284
      %v1149 = vunpack.c.l.b16 %v285
      %v1150 = vunpack.c.l.b16 %v286
      %v1151 = vunpack.c.l.b16 %v287
      %v1152 = vunpack.c.l.b16 %v288
      %v1153 = vunpack.c.l.b16 %v289
      %v1154 = vunpack.c.l.b16 %v290
      %v1155 = vunpack.c.l.b16 %v291
      %v1156 = vunpack.c.l.b16 %v292
      %v1157 = vunpack.c.l.b16 %v293
      %v1158 = vunpack.c.l.b16 %v294
      %v1159 = vunpack.c.l.b16 %v295
      %v1160 = vunpack.c.l.b16 %v296
      %v1161 = vunpack.c.l.b16 %v297
      %v1162 = vunpack.c.l.b16 %v298
      %v1163 = vunpack.c.l.b16 %v299
      %v1164 = vunpack.c.l.b16 %v300
      %v1165 = vunpack.c.l.b16 %v301
      %v1166 = vunpack.c.l.b16 %v302
      %v1167 = vunpack.c.l.b16 %v303
      %v1168 = vunpack.c.l.b16 %v304
      %v1169 = vunpack.c.l.b16 %v305
      %v1170 = vunpack.c.l.b16 %v306
      %v1171 = vunpack.c.l.b16 %v307
      %v1172 = vunpack.c.l.b16 %v308
      %v1173 = vunpack.c.l.b16 %v309
      %v1174 = vunpack.c.l.b16 %v310
      %v1175 = vunpack.c.l.b16 %v311
      %v1176 = vunpack.c.l.b16 %v312
      %v1177 = vunpack.c.l.b16 %v313
      %v1178 = vunpack.c.l.b16 %v314
      %v1179 = vunpack.c.l.b16 %v315
      %v1180 = vunpack.c.l.b16 %v316
      %v1181 = vunpack.c.l.b16 %v317
      %v1182 = vunpack.c.l.b16 %v318
      %v1183 = vunpack.c.l.b16 %v319
      %v1184 = vunpack.c.l.b16 %v320
      %v1185 = vunpack.c.l.b16 %v321
      %v1186 = vunpack.c.l.b16 %v322
      %v1187 = vunpack.c.l.b16 %v323
      %v1188 = vunpack.c.l.b16 %v324
      %v1189 = vunpack.c.l.b16 %v325
      %v1190 = vunpack.c.l.b16 %v326
      %v1191 = vunpack.c.l.b16 %v327
      %v1192 = vunpack.c.l.b16 %v328
      %v1193 = vunpack.c.l.b16 %v329
      %v1194 = vunpack.c.l.b16 %v330
      %v1195 = vunpack.c.l.b16 %v331
      %v1196 = vunpack.c.l.b16 %v332
      %v1197 = vunpack.c.l.b16 %v333
      %v1198 = vunpack.c.l.b16 %v334
      %v1199 = vunpack.c.l.b16 %v335
      %v1200 = vunpack.c.l.b16 %v336
      %v1201 = vunpack.c.l.b16 %v337
      %v1202 = vunpack.c.l.b16 %v338
      %v1203 = vunpack.c.l.b16 %v339
      %v1204 = vunpack.c.l.b16 %v340
      %v1205 = vunpack.c.l.b16 %v341
      %v1206 = vunpack.c.l.b16 %v342
      %v1207 = vunpack.c.l.b16 %v343
      %v1208 = vunpack.c.l.b16 %v344
      %v1209 = vunpack.c.l.b16 %v345
      %v1210 = vunpack.c.l.b16 %v346
      %v1211 = vunpack.c.l.b16 %v347
      %v1212 = vunpack.c.l.b16 %v348
      %v1213 = vunpack.c.l.b16 %v349
      %v1214 = vunpack.c.l.b16 %v350
      %v1215 = vunpack.c.l.b16 %v351
      %v1216 = vunpack.c.l.b16 %v352
      %v1217 = vunpack.c.l.b16 %v353
      %v1218 = vunpack.c.l.b16 %v354
      %v1219 = vunpack.c.l.b16 %v355
      %v1220 = vunpack.c.l.b16 %v356
      %v1221 = vunpack.c.l.b16 %v357
      %v1222 = vunpack.c.l.b16 %v358
      %v1223 = vunpack.c.l.b16 %v359
      %v1224 = vunpack.c.l.b16 %v360
      %v1225 = vunpack.c.l.b16 %v361
      %v1226 = vunpack.c.l.b16 %v362
      %v1227 = vunpack.c.l.b16 %v363
      %v1228 = vunpack.c.l.b16 %v364
      %v1229 = vunpack.c.l.b16 %v365
      %v1230 = vunpack.c.l.b16 %v366
      %v1231 = vunpack.c.l.b16 %v367
      %v1232 = vunpack.c.l.b16 %v368
      %v1233 = vunpack.c.l.b16 %v369
      %v1234 = vunpack.c.l.b16 %v370
      %v1235 = vunpack.c.l.b16 %v371
      %v1236 = vunpack.c.l.b16 %v372
      %v1237 = vunpack.c.l.b16 %v373
      %v1238 = vunpack.c.l.b16 %v374
      %v1239 = vunpack.c.l.b16 %v375
      %v1240 = vunpack.c.l.b16 %v376
      %v1241 = vunpack.c.l.b16 %v377
      %v1242 = vunpack.c.l.b16 %v378
      %v1243 = vunpack.c.l.b16 %v379
      %v1244 = vunpack.c.l.b16 %v380
      %v1245 = vunpack.c.l.b16 %v381
      %v1246 = vunpack.c.l.b16 %v382
      %v1247 = vunpack.c.l.b16 %v383
      %v1248 = vunpack.c.l.b16 %v384
      %v1249 = vunpack.c.l.b16 %v385
      %v1250 = vunpack.c.l.b16 %v386
      %v1251 = vunpack.c.l.b16 %v387
      %v1252 = vunpack.c.l.b16 %v388
      %v1253 = vunpack.c.l.b16 %v389
      %v1254 = vunpack.c.l.b16 %v390
      %v1255 = vunpack.c.l.b16 %v391
      %v1256 = vunpack.c.l.b16 %v392
      %v1257 = vunpack.c.l.b16 %v393
      %v1258 = vunpack.c.l.b16 %v394
      %v1259 = vunpack.c.l.b16 %v395
      %v1260 = vunpack.c.l.b16 %v396
      %v1261 = vunpack.c.l.b16 %v397
      %v1262 = vunpack.c.l.b16 %v398
      %v1263 = vunpack.c.l.b16 %v399
      %v1264 = vunpack.c.l.b16 %v400
      %v1265 = vunpack.c.l.b16 %v401
      %v1266 = vunpack.c.l.b16 %v402
      %v1267 = vunpack.c.l.b16 %v403
      %v1268 = vunpack.c.l.b16 %v404
      %v1269 = vunpack.c.l.b16 %v405
      %v1270 = vunpack.c.l.b16 %v406
      %v1271 = vunpack.c.l.b16 %v407
      %v1272 = vunpack.c.l.b16 %v408
      %v1273 = vunpack.c.l.b16 %v409
      %v1274 = vunpack.c.l.b16 %v410
      %v1275 = vunpack.c.l.b16 %v411
      %v1276 = vunpack.c.l.b16 %v412
      %v1277 = vunpack.c.l.b16 %v413
      %v1278 = vunpack.c.l.b16 %v414
      %v1279 = vunpack.c.l.b16 %v415
      %v1280 = vunpack.c.l.b16 %v416
      %v1281 = vunpack.c.l.b16 %v417
      %v1282 = vunpack.c.l.b16 %v418
      %v1283 = vunpack.c.l.b16 %v419
      %v1284 = vunpack.c.l.b16 %v420
      %v1285 = vunpack.c.l.b16 %v421
      %v1286 = vunpack.c.l.b16 %v422
      %v1287 = vunpack.c.l.b16 %v423
      %v1288 = vunpack.c.l.b16 %v424
      %v1289 = vunpack.c.l.b16 %v425
      %v1290 = vunpack.c.l.b16 %v426
      %v1291 = vunpack.c.l.b16 %v427
      %v1292 = vunpack.c.l.b16 %v428
      %v1293 = vunpack.c.l.b16 %v429
      %v1294 = vunpack.c.l.b16 %v430
      %v1295 = vunpack.c.l.b16 %v431
      %v1296 = vunpack.c.l.b16 %v432
      %v1297 = vunpack.c.l.b16 %v433
      %v1298 = vunpack.c.l.b16 %v434
      %v1299 = vunpack.c.l.b16 %v435
      %v1300 = vunpack.c.l.b16 %v436
      %v1301 = vunpack.c.l.b16 %v437
      %v1302 = vunpack.c.l.b16 %v438
      %v1303 = vunpack.c.l.b16 %v439
      %v1304 = vunpack.c.l.b16 %v440
      %v1305 = vunpack.c.l.b16 %v441
      %v1306 = vunpack.c.l.b16 %v442
      %v1307 = vunpack.c.l.b16 %v443
      %v1308 = vunpack.c.l.b16 %v444
      %v1309 = vunpack.c.l.b16 %v445
      %v1310 = vunpack.c.l.b16 %v446
      %v1311 = vunpack.c.l.b16 %v447
      %v1312 = vunpack.c.l.b16 %v448
      %v1313 = vunpack.c.l.b16 %v449
      %v1314 = vunpack.c.l.b16 %v450
      %v1315 = vunpack.c.l.b16 %v451
      %v1316 = vunpack.c.l.b16 %v452
      %v1317 = vunpack.c.l.b16 %v453
      %v1318 = vunpack.c.l.b16 %v454
      %v1319 = vunpack.c.l.b16 %v455
      %v1320 = vunpack.c.l.b16 %v456
      %v1321 = vunpack.c.l.b16 %v457
      %v1322 = vunpack.c.l.b16 %v458
      %v1323 = vunpack.c.l.b16 %v459
      %v1324 = vunpack.c.l.b16 %v460
      %v1325 = vunpack.c.l.b16 %v461
      %v1326 = vunpack.c.l.b16 %v462
      %v1327 = vpack.c.b16 %v1136, %v1135
      %v1328 = vpack.c.b16 %v1138, %v1137
      %v1329 = vpack.c.b16 %v1140, %v1139
      %v1330 = vpack.c.b16 %v1142, %v1141
      %v1331 = vpack.c.b16 %v1144, %v1143
      %v1332 = vpack.c.b16 %v1146, %v1145
      %v1333 = vpack.c.b16 %v1148, %v1147
      %v1334 = vpack.c.b16 %v1150, %v1149
      %v1335 = vpack.c.b16 %v1152, %v1151
      %v1336 = vpack.c.b16 %v1154, %v1153
      %v1337 = vpack.c.b16 %v1156, %v1155
      %v1338 = vpack.c.b16 %v1158, %v1157
      %v1339 = vpack.c.b16 %v1160, %v1159
      %v1340 = vpack.c.b16 %v1162, %v1161
      %v1341 = vpack.c.b16 %v1164, %v1163
      %v1342 = vpack.c.b16 %v1166, %v1165
      %v1343 = vpack.c.b16 %v1168, %v1167
      %v1344 = vpack.c.b16 %v1170, %v1169
      %v1345 = vpack.c.b16 %v1172, %v1171
      %v1346 = vpack.c.b16 %v1174, %v1173
      %v1347 = vpack.c.b16 %v1176, %v1175
      %v1348 = vpack.c.b16 %v1178, %v1177
      %v1349 = vpack.c.b16 %v1180, %v1179
      %v1350 = vpack.c.b16 %v1182, %v1181
      %v1351 = vpack.c.b16 %v1184, %v1183
      %v1352 = vpack.c.b16 %v1186, %v1185
      %v1353 = vpack.c.b16 %v1188, %v1187
      %v1354 = vpack.c.b16 %v1190, %v1189
      %v1355 = vpack.c.b16 %v1192, %v1191
      %v1356 = vpack.c.b16 %v1194, %v1193
      %v1357 = vpack.c.b16 %v1196, %v1195
      %v1358 = vpack.c.b16 %v1198, %v1197
      %v1359 = vpack.c.b16 %v1200, %v1199
      %v1360 = vpack.c.b16 %v1202, %v1201
      %v1361 = vpack.c.b16 %v1204, %v1203
      %v1362 = vpack.c.b16 %v1206, %v1205
      %v1363 = vpack.c.b16 %v1208, %v1207
      %v1364 = vpack.c.b16 %v1210, %v1209
      %v1365 = vpack.c.b16 %v1212, %v1211
      %v1366 = vpack.c.b16 %v1214, %v1213
      %v1367 = vpack.c.b16 %v1216, %v1215
      %v1368 = vpack.c.b16 %v1218, %v1217
      %v1369 = vpack.c.b16 %v1220, %v1219
      %v1370 = vpack.c.b16 %v1222, %v1221
      %v1371 = vpack.c.b16 %v1224, %v1223
      %v1372 = vpack.c.b16 %v1226, %v1225
      %v1373 = vpack.c.b16 %v1228, %v1227
      %v1374 = vpack.c.b16 %v1230, %v1229
      %v1375 = vpack.c.b16 %v1232, %v1231
      %v1376 = vpack.c.b16 %v1234, %v1233
      %v1377 = vpack.c.b16 %v1236, %v1235
      %v1378 = vpack.c.b16 %v1238, %v1237
      %v1379 = vpack.c.b16 %v1240, %v1239
      %v1380 = vpack.c.b16 %v1242, %v1241
      %v1381 = vpack.c.b16 %v1244, %v1243
      %v1382 = vpack.c.b16 %v1246, %v1245
      %v1383 = vpack.c.b16 %v1248, %v1247
      %v1384 = vpack.c.b16 %v1250, %v1249
      %v1385 = vpack.c.b16 %v1252, %v1251
      %v1386 = vpack.c.b16 %v1254, %v1253
      %v1387 = vpack.c.b16 %v1256, %v1255
      %v1388 = vpack.c.b16 %v1258, %v1257
      %v1389 = vpack.c.b16 %v1260, %v1259
      %v1390 = vpack.c.b16 %v1262, %v1261
      %v1391 = vpack.c.b16 %v1264, %v1263
      %v1392 = vpack.c.b16 %v1266, %v1265
      %v1393 = vpack.c.b16 %v1268, %v1267
      %v1394 = vpack.c.b16 %v1270, %v1269
      %v1395 = vpack.c.b16 %v1272, %v1271
      %v1396 = vpack.c.b16 %v1274, %v1273
      %v1397 = vpack.c.b16 %v1276, %v1275
      %v1398 = vpack.c.b16 %v1278, %v1277
      %v1399 = vpack.c.b16 %v1280, %v1279
      %v1400 = vpack.c.b16 %v1282, %v1281
      %v1401 = vpack.c.b16 %v1284, %v1283
      %v1402 = vpack.c.b16 %v1286, %v1285
      %v1403 = vpack.c.b16 %v1288, %v1287
      %v1404 = vpack.c.b16 %v1290, %v1289
      %v1405 = vpack.c.b16 %v1292, %v1291
      %v1406 = vpack.c.b16 %v1294, %v1293
      %v1407 = vpack.c.b16 %v1296, %v1295
      %v1408 = vpack.c.b16 %v1298, %v1297
      %v1409 = vpack.c.b16 %v1300, %v1299
      %v1410 = vpack.c.b16 %v1302, %v1301
      %v1411 = vpack.c.b16 %v1304, %v1303
      %v1412 = vpack.c.b16 %v1306, %v1305
      %v1413 = vpack.c.b16 %v1308, %v1307
      %v1414 = vpack.c.b16 %v1310, %v1309
      %v1415 = vpack.c.b16 %v1312, %v1311
      %v1416 = vpack.c.b16 %v1314, %v1313
      %v1417 = vpack.c.b16 %v1316, %v1315
      %v1418 = vpack.c.b16 %v1318, %v1317
      %v1419 = vpack.c.b16 %v1320, %v1319
      %v1420 = vpack.c.b16 %v1322, %v1321
      %v1421 = vpack.c.b16 %v1324, %v1323
      %v1422 = vpack.c.b16 %v1326, %v1325
      %1519 = vmatprep.subr.bf16.mxu0 0
      %1520 = vmatpush1.bf16.msra.mxu0 %v1327
      %1521 = vmatprep.subr.bf16.mxu0 0
      %1522 = vmatpush1.bf16.msra.mxu0 %v1328
      %1523 = vmatprep.subr.bf16.mxu0 0
      %1524 = vmatpush1.bf16.msra.mxu0 %v1329
      %1525 = vmatprep.subr.bf16.mxu0 0
      %1526 = vmatpush1.bf16.msra.mxu0 %v1330
      %1527 = vmatprep.subr.bf16.mxu0 0
      %1528 = vmatpush1.bf16.msra.mxu0 %v1331
      %1529 = vmatprep.subr.bf16.mxu0 0
      %1530 = vmatpush1.bf16.msra.mxu0 %v1332
      %1531 = vmatprep.subr.bf16.mxu0 0
      %1532 = vmatpush1.bf16.msra.mxu0 %v1333
      %1533 = vmatprep.subr.bf16.mxu0 0
      %1534 = vmatpush1.bf16.msra.mxu0 %v1334
      %1535 = vmatprep.subr.bf16.mxu0 0
      %1536 = vmatpush1.bf16.msra.mxu0 %v1335
      %1537 = vmatprep.subr.bf16.mxu0 0
      %1538 = vmatpush1.bf16.msra.mxu0 %v1336
      %1539 = vmatprep.subr.bf16.mxu0 0
      %1540 = vmatpush1.bf16.msra.mxu0 %v1337
      %1541 = vmatprep.subr.bf16.mxu0 0
      %1542 = vmatpush1.bf16.msra.mxu0 %v1338
      %1543 = vmatprep.subr.bf16.mxu0 0
      %1544 = vmatpush1.bf16.msra.mxu0 %v1339
      %1545 = vmatprep.subr.bf16.mxu0 0
      %1546 = vmatpush1.bf16.msra.mxu0 %v1340
      %1547 = vmatprep.subr.bf16.mxu0 0
      %1548 = vmatpush1.bf16.msra.mxu0 %v1341
      %1549 = vmatprep.subr.bf16.mxu0 0
      %1550 = vmatpush1.bf16.msra.mxu0 %v1342
      %1551 = vmatprep.mubr.bf16.mxu0 %v752
      %1552 = vmatmul.mubr.bf16.gmra.mrb[0].mxu0 %v751
      %v1553 = vpop.f32.mrb[0].mxu0
      %v1554 = vadd.f32 0.0, %v1553
      %v1555 = vpop.f32.mrb[0].mxu0
      %v1556 = vpop.f32.mrb[0].mxu0
      %v1557 = vadd.f32 0.0, %v1556
      %v1558 = vpop.f32.mrb[0].mxu0
      %1559 = vmatprep.mubr.bf16.mxu0 %v764
      %1560 = vmatmul.mubr.bf16.gmra.mrb[0].mxu0 %v763
      %v1561 = vpop.f32.mrb[0].mxu0
      %v1562 = vadd.f32 0.0, %v1561
      %v1563 = vpop.f32.mrb[0].mxu0
      %v1564 = vpop.f32.mrb[0].mxu0
      %v1565 = vadd.f32 0.0, %v1564
      %v1566 = vpop.f32.mrb[0].mxu0
      %1567 = vmatprep.mubr.bf16.mxu0 %v776
      %1568 = vmatmul.mubr.bf16.gmra.mrb[0].mxu0 %v775
      %v1569 = vpop.f32.mrb[0].mxu0
      %v1570 = vadd.f32 0.0, %v1569
      %v1571 = vpop.f32.mrb[0].mxu0
      %v1572 = vpop.f32.mrb[0].mxu0
      %v1573 = vadd.f32 0.0, %v1572
      %v1574 = vpop.f32.mrb[0].mxu0
      %1575 = vmatprep.mubr.bf16.mxu0 %v788
      %1576 = vmatmul.mubr.bf16.gmra.mrb[0].mxu0 %v787
      %v1577 = vpop.f32.mrb[0].mxu0
      %v1578 = vadd.f32 0.0, %v1577
      %v1579 = vpop.f32.mrb[0].mxu0
      %v1580 = vpop.f32.mrb[0].mxu0
      %v1581 = vadd.f32 0.0, %v1580
      %v1582 = vpop.f32.mrb[0].mxu0
      %1583 = vmatprep.mubr.bf16.mxu0 %v800
      %1584 = vmatmul.mubr.bf16.gmra.mrb[0].mxu0 %v799
      %v1585 = vpop.f32.mrb[0].mxu0
      %v1586 = vadd.f32 0.0, %v1585
      %v1587 = vpop.f32.mrb[0].mxu0
      %v1588 = vpop.f32.mrb[0].mxu0
      %v1589 = vadd.f32 0.0, %v1588
      %v1590 = vpop.f32.mrb[0].mxu0
      %1591 = vmatprep.mubr.bf16.mxu0 %v812
      %1592 = vmatmul.mubr.bf16.gmra.mrb[0].mxu0 %v811
      %v1593 = vpop.f32.mrb[0].mxu0
      %v1594 = vadd.f32 0.0, %v1593
      %v1595 = vpop.f32.mrb[0].mxu0
      %v1596 = vpop.f32.mrb[0].mxu0
      %v1597 = vadd.f32 0.0, %v1596
      %v1598 = vpop.f32.mrb[0].mxu0
      %1599 = vmatprep.mubr.bf16.mxu0 %v824
      %1600 = vmatmul.mubr.bf16.gmra.mrb[0].mxu0 %v823
      %v1601 = vpop.f32.mrb[0].mxu0
      %v1602 = vadd.f32 0.0, %v1601
      %v1603 = vpop.f32.mrb[0].mxu0
      %v1604 = vpop.f32.mrb[0].mxu0
      %v1605 = vadd.f32 0.0, %v1604
      %v1606 = vpop.f32.mrb[0].mxu0
      %1607 = vmatprep.mubr.bf16.mxu0 %v836
      %1608 = vmatmul.mubr.bf16.gmra.mrb[0].mxu0 %v835
      %v1609 = vpop.f32.mrb[0].mxu0
      %v1610 = vadd.f32 0.0, %v1609
      %v1611 = vpop.f32.mrb[0].mxu0
      %v1612 = vpop.f32.mrb[0].mxu0
      %v1613 = vadd.f32 0.0, %v1612
      %v1614 = vpop.f32.mrb[0].mxu0
      %1615 = vdwg.mxu0
      %1616 = vmatprep.subr.bf16.mxu0 0
      %1617 = vmatpush1.bf16.msra.mxu0 %v1343
      %1618 = vmatprep.subr.bf16.mxu0 0
      %1619 = vmatpush1.bf16.msra.mxu0 %v1344
      %1620 = vmatprep.subr.bf16.mxu0 0
      %1621 = vmatpush1.bf16.msra.mxu0 %v1345
      %1622 = vmatprep.subr.bf16.mxu0 0
      %1623 = vmatpush1.bf16.msra.mxu0 %v1346
      %1624 = vmatprep.subr.bf16.mxu0 0
      %1625 = vmatpush1.bf16.msra.mxu0 %v1347
      %1626 = vmatprep.subr.bf16.mxu0 0
      %1627 = vmatpush1.bf16.msra.mxu0 %v1348
      %1628 = vmatprep.subr.bf16.mxu0 0
      %1629 = vmatpush1.bf16.msra.mxu0 %v1349
      %1630 = vmatprep.subr.bf16.mxu0 0
      %1631 = vmatpush1.bf16.msra.mxu0 %v1350
      %1632 = vmatprep.subr.bf16.mxu0 0
      %1633 = vmatpush1.bf16.msra.mxu0 %v1351
      %1634 = vmatprep.subr.bf16.mxu0 0
      %1635 = vmatpush1.bf16.msra.mxu0 %v1352
      %1636 = vmatprep.subr.bf16.mxu0 0
      %1637 = vmatpush1.bf16.msra.mxu0 %v1353
      %1638 = vmatprep.subr.bf16.mxu0 0
      %1639 = vmatpush1.bf16.msra.mxu0 %v1354
      %1640 = vmatprep.subr.bf16.mxu0 0
      %1641 = vmatpush1.bf16.msra.mxu0 %v1355
      %1642 = vmatprep.subr.bf16.mxu0 0
      %1643 = vmatpush1.bf16.msra.mxu0 %v1356
      %1644 = vmatprep.subr.bf16.mxu0 0
      %1645 = vmatpush1.bf16.msra.mxu0 %v1357
      %1646 = vmatprep.subr.bf16.mxu0 0
      %1647 = vmatpush1.bf16.msra.mxu0 %v1358
      %1648 = vmatprep.mubr.bf16.mxu0 %v754
      %1649 = vmatmul.mubr.bf16.gmra.mrb[0].mxu0 %v753
      %v1650 = vpop.f32.mrb[0].mxu0
      %v1651 = vadd.f32 %v1554, %v1650
      %v1652 = vpop.f32.mrb[0].mxu0
      %v1653 = vpop.f32.mrb[0].mxu0
      %v1654 = vadd.f32 %v1557, %v1653
      %v1655 = vpop.f32.mrb[0].mxu0
      %1656 = vmatprep.mubr.bf16.mxu0 %v766
      %1657 = vmatmul.mubr.bf16.gmra.mrb[0].mxu0 %v765
      %v1658 = vpop.f32.mrb[0].mxu0
      %v1659 = vadd.f32 %v1562, %v1658
      %v1660 = vpop.f32.mrb[0].mxu0
      %v1661 = vpop.f32.mrb[0].mxu0
      %v1662 = vadd.f32 %v1565, %v1661
      %v1663 = vpop.f32.mrb[0].mxu0
      %1664 = vmatprep.mubr.bf16.mxu0 %v778
      %1665 = vmatmul.mubr.bf16.gmra.mrb[0].mxu0 %v777
      %v1666 = vpop.f32.mrb[0].mxu0
      %v1667 = vadd.f32 %v1570, %v1666
      %v1668 = vpop.f32.mrb[0].mxu0
      %v1669 = vpop.f32.mrb[0].mxu0
      %v1670 = vadd.f32 %v1573, %v1669
      %v1671 = vpop.f32.mrb[0].mxu0
      %1672 = vmatprep.mubr.bf16.mxu0 %v790
      %1673 = vmatmul.mubr.bf16.gmra.mrb[0].mxu0 %v789
      %v1674 = vpop.f32.mrb[0].mxu0
      %v1675 = vadd.f32 %v1578, %v1674
      %v1676 = vpop.f32.mrb[0].mxu0
      %v1677 = vpop.f32.mrb[0].mxu0
      %v1678 = vadd.f32 %v1581, %v1677
      %v1679 = vpop.f32.mrb[0].mxu0
      %1680 = vmatprep.mubr.bf16.mxu0 %v802
      %1681 = vmatmul.mubr.bf16.gmra.mrb[0].mxu0 %v801
      %v1682 = vpop.f32.mrb[0].mxu0
      %v1683 = vadd.f32 %v1586, %v1682
      %v1684 = vpop.f32.mrb[0].mxu0
      %v1685 = vpop.f32.mrb[0].mxu0
      %v1686 = vadd.f32 %v1589, %v1685
      %v1687 = vpop.f32.mrb[0].mxu0
      %1688 = vmatprep.mubr.bf16.mxu0 %v814
      %1689 = vmatmul.mubr.bf16.gmra.mrb[0].mxu0 %v813
      %v1690 = vpop.f32.mrb[0].mxu0
      %v1691 = vadd.f32 %v1594, %v1690
      %v1692 = vpop.f32.mrb[0].mxu0
      %v1693 = vpop.f32.mrb[0].mxu0
      %v1694 = vadd.f32 %v1597, %v1693
      %v1695 = vpop.f32.mrb[0].mxu0
      %1696 = vmatprep.mubr.bf16.mxu0 %v826
      %1697 = vmatmul.mubr.bf16.gmra.mrb[0].mxu0 %v825
      %v1698 = vpop.f32.mrb[0].mxu0
      %v1699 = vadd.f32 %v1602, %v1698
      %v1700 = vpop.f32.mrb[0].mxu0
      %v1701 = vpop.f32.mrb[0].mxu0
      %v1702 = vadd.f32 %v1605, %v1701
      %v1703 = vpop.f32.mrb[0].mxu0
      %1704 = vmatprep.mubr.bf16.mxu0 %v838
      %1705 = vmatmul.mubr.bf16.gmra.mrb[0].mxu0 %v837
      %v1706 = vpop.f32.mrb[0].mxu0
      %v1707 = vadd.f32 %v1610, %v1706
      %v1708 = vpop.f32.mrb[0].mxu0
      %v1709 = vpop.f32.mrb[0].mxu0
      %v1710 = vadd.f32 %v1613, %v1709
      %v1711 = vpop.f32.mrb[0].mxu0
      %1712 = vdwg.mxu0
      %1713 = vmatprep.subr.bf16.mxu0 0
      %1714 = vmatpush1.bf16.msra.mxu0 %v1359
      %1715 = vmatprep.subr.bf16.mxu0 0
      %1716 = vmatpush1.bf16.msra.mxu0 %v1360
      %1717 = vmatprep.subr.bf16.mxu0 0
      %1718 = vmatpush1.bf16.msra.mxu0 %v1361
      %1719 = vmatprep.subr.bf16.mxu0 0
      %1720 = vmatpush1.bf16.msra.mxu0 %v1362
      %1721 = vmatprep.subr.bf16.mxu0 0
      %1722 = vmatpush1.bf16.msra.mxu0 %v1363
      %1723 = vmatprep.subr.bf16.mxu0 0
      %1724 = vmatpush1.bf16.msra.mxu0 %v1364
      %1725 = vmatprep.subr.bf16.mxu0 0
      %1726 = vmatpush1.bf16.msra.mxu0 %v1365
      %1727 = vmatprep.subr.bf16.mxu0 0
      %1728 = vmatpush1.bf16.msra.mxu0 %v1366
      %1729 = vmatprep.subr.bf16.mxu0 0
      %1730 = vmatpush1.bf16.msra.mxu0 %v1367
      %1731 = vmatprep.subr.bf16.mxu0 0
      %1732 = vmatpush1.bf16.msra.mxu0 %v1368
      %1733 = vmatprep.subr.bf16.mxu0 0
      %1734 = vmatpush1.bf16.msra.mxu0 %v1369
      %1735 = vmatprep.subr.bf16.mxu0 0
      %1736 = vmatpush1.bf16.msra.mxu0 %v1370
      %1737 = vmatprep.subr.bf16.mxu0 0
      %1738 = vmatpush1.bf16.msra.mxu0 %v1371
      %1739 = vmatprep.subr.bf16.mxu0 0
      %1740 = vmatpush1.bf16.msra.mxu0 %v1372
      %1741 = vmatprep.subr.bf16.mxu0 0
      %1742 = vmatpush1.bf16.msra.mxu0 %v1373
      %1743 = vmatprep.subr.bf16.mxu0 0
      %1744 = vmatpush1.bf16.msra.mxu0 %v1374
      %1745 = vmatprep.mubr.bf16.mxu0 %v756
      %1746 = vmatmul.mubr.bf16.gmra.mrb[0].mxu0 %v755
      %v1747 = vpop.f32.mrb[0].mxu0
      %v1748 = vadd.f32 %v1651, %v1747
      %v1749 = vpop.f32.mrb[0].mxu0
      %v1750 = vpop.f32.mrb[0].mxu0
      %v1751 = vadd.f32 %v1654, %v1750
      %v1752 = vpop.f32.mrb[0].mxu0
      %1753 = vmatprep.mubr.bf16.mxu0 %v768
      %1754 = vmatmul.mubr.bf16.gmra.mrb[0].mxu0 %v767
      %v1755 = vpop.f32.mrb[0].mxu0
      %v1756 = vadd.f32 %v1659, %v1755
      %v1757 = vpop.f32.mrb[0].mxu0
      %v1758 = vpop.f32.mrb[0].mxu0
      %v1759 = vadd.f32 %v1662, %v1758
      %v1760 = vpop.f32.mrb[0].mxu0
      %1761 = vmatprep.mubr.bf16.mxu0 %v780
      %1762 = vmatmul.mubr.bf16.gmra.mrb[0].mxu0 %v779
      %v1763 = vpop.f32.mrb[0].mxu0
      %v1764 = vadd.f32 %v1667, %v1763
      %v1765 = vpop.f32.mrb[0].mxu0
      %v1766 = vpop.f32.mrb[0].mxu0
      %v1767 = vadd.f32 %v1670, %v1766
      %v1768 = vpop.f32.mrb[0].mxu0
      %1769 = vmatprep.mubr.bf16.mxu0 %v792
      %1770 = vmatmul.mubr.bf16.gmra.mrb[0].mxu0 %v791
      %v1771 = vpop.f32.mrb[0].mxu0
      %v1772 = vadd.f32 %v1675, %v1771
      %v1773 = vpop.f32.mrb[0].mxu0
      %v1774 = vpop.f32.mrb[0].mxu0
      %v1775 = vadd.f32 %v1678, %v1774
      %v1776 = vpop.f32.mrb[0].mxu0
      %1777 = vmatprep.mubr.bf16.mxu0 %v804
      %1778 = vmatmul.mubr.bf16.gmra.mrb[0].mxu0 %v803
      %v1779 = vpop.f32.mrb[0].mxu0
      %v1780 = vadd.f32 %v1683, %v1779
      %v1781 = vpop.f32.mrb[0].mxu0
      %v1782 = vpop.f32.mrb[0].mxu0
      %v1783 = vadd.f32 %v1686, %v1782
      %v1784 = vpop.f32.mrb[0].mxu0
      %1785 = vmatprep.mubr.bf16.mxu0 %v816
      %1786 = vmatmul.mubr.bf16.gmra.mrb[0].mxu0 %v815
      %v1787 = vpop.f32.mrb[0].mxu0
      %v1788 = vadd.f32 %v1691, %v1787
      %v1789 = vpop.f32.mrb[0].mxu0
      %v1790 = vpop.f32.mrb[0].mxu0
      %v1791 = vadd.f32 %v1694, %v1790
      %v1792 = vpop.f32.mrb[0].mxu0
      %1793 = vmatprep.mubr.bf16.mxu0 %v828
      %1794 = vmatmul.mubr.bf16.gmra.mrb[0].mxu0 %v827
      %v1795 = vpop.f32.mrb[0].mxu0
      %v1796 = vadd.f32 %v1699, %v1795
      %v1797 = vpop.f32.mrb[0].mxu0
      %v1798 = vpop.f32.mrb[0].mxu0
      %v1799 = vadd.f32 %v1702, %v1798
      %v1800 = vpop.f32.mrb[0].mxu0
      %1801 = vmatprep.mubr.bf16.mxu0 %v840
      %1802 = vmatmul.mubr.bf16.gmra.mrb[0].mxu0 %v839
      %v1803 = vpop.f32.mrb[0].mxu0
      %v1804 = vadd.f32 %v1707, %v1803
      %v1805 = vpop.f32.mrb[0].mxu0
      %v1806 = vpop.f32.mrb[0].mxu0
      %v1807 = vadd.f32 %v1710, %v1806
      %v1808 = vpop.f32.mrb[0].mxu0
      %1809 = vdwg.mxu0
      %1810 = vmatprep.subr.bf16.mxu0 0
      %1811 = vmatpush1.bf16.msra.mxu0 %v1375
      %1812 = vmatprep.subr.bf16.mxu0 0
      %1813 = vmatpush1.bf16.msra.mxu0 %v1376
      %1814 = vmatprep.subr.bf16.mxu0 0
      %1815 = vmatpush1.bf16.msra.mxu0 %v1377
      %1816 = vmatprep.subr.bf16.mxu0 0
      %1817 = vmatpush1.bf16.msra.mxu0 %v1378
      %1818 = vmatprep.subr.bf16.mxu0 0
      %1819 = vmatpush1.bf16.msra.mxu0 %v1379
      %1820 = vmatprep.subr.bf16.mxu0 0
      %1821 = vmatpush1.bf16.msra.mxu0 %v1380
      %1822 = vmatprep.subr.bf16.mxu0 0
      %1823 = vmatpush1.bf16.msra.mxu0 %v1381
      %1824 = vmatprep.subr.bf16.mxu0 0
      %1825 = vmatpush1.bf16.msra.mxu0 %v1382
      %1826 = vmatprep.subr.bf16.mxu0 0
      %1827 = vmatpush1.bf16.msra.mxu0 %v1383
      %1828 = vmatprep.subr.bf16.mxu0 0
      %1829 = vmatpush1.bf16.msra.mxu0 %v1384
      %1830 = vmatprep.subr.bf16.mxu0 0
      %1831 = vmatpush1.bf16.msra.mxu0 %v1385
      %1832 = vmatprep.subr.bf16.mxu0 0
      %1833 = vmatpush1.bf16.msra.mxu0 %v1386
      %1834 = vmatprep.subr.bf16.mxu0 0
      %1835 = vmatpush1.bf16.msra.mxu0 %v1387
      %1836 = vmatprep.subr.bf16.mxu0 0
      %1837 = vmatpush1.bf16.msra.mxu0 %v1388
      %1838 = vmatprep.subr.bf16.mxu0 0
      %1839 = vmatpush1.bf16.msra.mxu0 %v1389
      %1840 = vmatprep.subr.bf16.mxu0 0
      %1841 = vmatpush1.bf16.msra.mxu0 %v1390
      %1842 = vmatprep.mubr.bf16.mxu0 %v758
      %1843 = vmatmul.mubr.bf16.gmra.mrb[0].mxu0 %v757
      %v1844 = vpop.f32.mrb[0].mxu0
      %v1845 = vadd.f32 %v1748, %v1844
      %v1846 = vpop.f32.mrb[0].mxu0
      %v1847 = vpop.f32.mrb[0].mxu0
      %v1848 = vadd.f32 %v1751, %v1847
      %v1849 = vpop.f32.mrb[0].mxu0
      %1850 = vmatprep.mubr.bf16.mxu0 %v770
      %1851 = vmatmul.mubr.bf16.gmra.mrb[0].mxu0 %v769
      %v1852 = vpop.f32.mrb[0].mxu0
      %v1853 = vadd.f32 %v1756, %v1852
      %v1854 = vpop.f32.mrb[0].mxu0
      %v1855 = vpop.f32.mrb[0].mxu0
      %v1856 = vadd.f32 %v1759, %v1855
      %v1857 = vpop.f32.mrb[0].mxu0
      %1858 = vmatprep.mubr.bf16.mxu0 %v782
      %1859 = vmatmul.mubr.bf16.gmra.mrb[0].mxu0 %v781
      %v1860 = vpop.f32.mrb[0].mxu0
      %v1861 = vadd.f32 %v1764, %v1860
      %v1862 = vpop.f32.mrb[0].mxu0
      %v1863 = vpop.f32.mrb[0].mxu0
      %v1864 = vadd.f32 %v1767, %v1863
      %v1865 = vpop.f32.mrb[0].mxu0
      %1866 = vmatprep.mubr.bf16.mxu0 %v794
      %1867 = vmatmul.mubr.bf16.gmra.mrb[0].mxu0 %v793
      %v1868 = vpop.f32.mrb[0].mxu0
      %v1869 = vadd.f32 %v1772, %v1868
      %v1870 = vpop.f32.mrb[0].mxu0
      %v1871 = vpop.f32.mrb[0].mxu0
      %v1872 = vadd.f32 %v1775, %v1871
      %v1873 = vpop.f32.mrb[0].mxu0
      %1874 = vmatprep.mubr.bf16.mxu0 %v806
      %1875 = vmatmul.mubr.bf16.gmra.mrb[0].mxu0 %v805
      %v1876 = vpop.f32.mrb[0].mxu0
      %v1877 = vadd.f32 %v1780, %v1876
      %v1878 = vpop.f32.mrb[0].mxu0
      %v1879 = vpop.f32.mrb[0].mxu0
      %v1880 = vadd.f32 %v1783, %v1879
      %v1881 = vpop.f32.mrb[0].mxu0
      %1882 = vmatprep.mubr.bf16.mxu0 %v818
      %1883 = vmatmul.mubr.bf16.gmra.mrb[0].mxu0 %v817
      %v1884 = vpop.f32.mrb[0].mxu0
      %v1885 = vadd.f32 %v1788, %v1884
      %v1886 = vpop.f32.mrb[0].mxu0
      %v1887 = vpop.f32.mrb[0].mxu0
      %v1888 = vadd.f32 %v1791, %v1887
      %v1889 = vpop.f32.mrb[0].mxu0
      %1890 = vmatprep.mubr.bf16.mxu0 %v830
      %1891 = vmatmul.mubr.bf16.gmra.mrb[0].mxu0 %v829
      %v1892 = vpop.f32.mrb[0].mxu0
      %v1893 = vadd.f32 %v1796, %v1892
      %v1894 = vpop.f32.mrb[0].mxu0
      %v1895 = vpop.f32.mrb[0].mxu0
      %v1896 = vadd.f32 %v1799, %v1895
      %v1897 = vpop.f32.mrb[0].mxu0
      %1898 = vmatprep.mubr.bf16.mxu0 %v842
      %1899 = vmatmul.mubr.bf16.gmra.mrb[0].mxu0 %v841
      %v1900 = vpop.f32.mrb[0].mxu0
      %v1901 = vadd.f32 %v1804, %v1900
      %v1902 = vpop.f32.mrb[0].mxu0
      %v1903 = vpop.f32.mrb[0].mxu0
      %v1904 = vadd.f32 %v1807, %v1903
      %v1905 = vpop.f32.mrb[0].mxu0
      %1906 = vdwg.mxu0
      %1907 = vmatprep.subr.bf16.mxu0 0
      %1908 = vmatpush1.bf16.msra.mxu0 %v1391
      %1909 = vmatprep.subr.bf16.mxu0 0
      %1910 = vmatpush1.bf16.msra.mxu0 %v1392
      %1911 = vmatprep.subr.bf16.mxu0 0
      %1912 = vmatpush1.bf16.msra.mxu0 %v1393
      %1913 = vmatprep.subr.bf16.mxu0 0
      %1914 = vmatpush1.bf16.msra.mxu0 %v1394
      %1915 = vmatprep.subr.bf16.mxu0 0
      %1916 = vmatpush1.bf16.msra.mxu0 %v1395
      %1917 = vmatprep.subr.bf16.mxu0 0
      %1918 = vmatpush1.bf16.msra.mxu0 %v1396
      %1919 = vmatprep.subr.bf16.mxu0 0
      %1920 = vmatpush1.bf16.msra.mxu0 %v1397
      %1921 = vmatprep.subr.bf16.mxu0 0
      %1922 = vmatpush1.bf16.msra.mxu0 %v1398
      %1923 = vmatprep.subr.bf16.mxu0 0
      %1924 = vmatpush1.bf16.msra.mxu0 %v1399
      %1925 = vmatprep.subr.bf16.mxu0 0
      %1926 = vmatpush1.bf16.msra.mxu0 %v1400
      %1927 = vmatprep.subr.bf16.mxu0 0
      %1928 = vmatpush1.bf16.msra.mxu0 %v1401
      %1929 = vmatprep.subr.bf16.mxu0 0
      %1930 = vmatpush1.bf16.msra.mxu0 %v1402
      %1931 = vmatprep.subr.bf16.mxu0 0
      %1932 = vmatpush1.bf16.msra.mxu0 %v1403
      %1933 = vmatprep.subr.bf16.mxu0 0
      %1934 = vmatpush1.bf16.msra.mxu0 %v1404
      %1935 = vmatprep.subr.bf16.mxu0 0
      %1936 = vmatpush1.bf16.msra.mxu0 %v1405
      %1937 = vmatprep.subr.bf16.mxu0 0
      %1938 = vmatpush1.bf16.msra.mxu0 %v1406
      %1939 = vmatprep.mubr.bf16.mxu0 %v760
      %1940 = vmatmul.mubr.bf16.gmra.mrb[0].mxu0 %v759
      %v1941 = vpop.f32.mrb[0].mxu0
      %v1942 = vadd.f32 %v1845, %v1941
      %v1943 = vpop.f32.mrb[0].mxu0
      %v1944 = vpop.f32.mrb[0].mxu0
      %v1945 = vadd.f32 %v1848, %v1944
      %v1946 = vpop.f32.mrb[0].mxu0
      %1947 = vmatprep.mubr.bf16.mxu0 %v772
      %1948 = vmatmul.mubr.bf16.gmra.mrb[0].mxu0 %v771
      %v1949 = vpop.f32.mrb[0].mxu0
      %v1950 = vadd.f32 %v1853, %v1949
      %v1951 = vpop.f32.mrb[0].mxu0
      %v1952 = vpop.f32.mrb[0].mxu0
      %v1953 = vadd.f32 %v1856, %v1952
      %v1954 = vpop.f32.mrb[0].mxu0
      %1955 = vmatprep.mubr.bf16.mxu0 %v784
      %1956 = vmatmul.mubr.bf16.gmra.mrb[0].mxu0 %v783
      %v1957 = vpop.f32.mrb[0].mxu0
      %v1958 = vadd.f32 %v1861, %v1957
      %v1959 = vpop.f32.mrb[0].mxu0
      %v1960 = vpop.f32.mrb[0].mxu0
      %v1961 = vadd.f32 %v1864, %v1960
      %v1962 = vpop.f32.mrb[0].mxu0
      %1963 = vmatprep.mubr.bf16.mxu0 %v796
      %1964 = vmatmul.mubr.bf16.gmra.mrb[0].mxu0 %v795
      %v1965 = vpop.f32.mrb[0].mxu0
      %v1966 = vadd.f32 %v1869, %v1965
      %v1967 = vpop.f32.mrb[0].mxu0
      %v1968 = vpop.f32.mrb[0].mxu0
      %v1969 = vadd.f32 %v1872, %v1968
      %v1970 = vpop.f32.mrb[0].mxu0
      %1971 = vmatprep.mubr.bf16.mxu0 %v808
      %1972 = vmatmul.mubr.bf16.gmra.mrb[0].mxu0 %v807
      %v1973 = vpop.f32.mrb[0].mxu0
      %v1974 = vadd.f32 %v1877, %v1973
      %v1975 = vpop.f32.mrb[0].mxu0
      %v1976 = vpop.f32.mrb[0].mxu0
      %v1977 = vadd.f32 %v1880, %v1976
      %v1978 = vpop.f32.mrb[0].mxu0
      %1979 = vmatprep.mubr.bf16.mxu0 %v820
      %1980 = vmatmul.mubr.bf16.gmra.mrb[0].mxu0 %v819
      %v1981 = vpop.f32.mrb[0].mxu0
      %v1982 = vadd.f32 %v1885, %v1981
      %v1983 = vpop.f32.mrb[0].mxu0
      %v1984 = vpop.f32.mrb[0].mxu0
      %v1985 = vadd.f32 %v1888, %v1984
      %v1986 = vpop.f32.mrb[0].mxu0
      %1987 = vmatprep.mubr.bf16.mxu0 %v832
      %1988 = vmatmul.mubr.bf16.gmra.mrb[0].mxu0 %v831
      %v1989 = vpop.f32.mrb[0].mxu0
      %v1990 = vadd.f32 %v1893, %v1989
      %v1991 = vpop.f32.mrb[0].mxu0
      %v1992 = vpop.f32.mrb[0].mxu0
      %v1993 = vadd.f32 %v1896, %v1992
      %v1994 = vpop.f32.mrb[0].mxu0
      %1995 = vmatprep.mubr.bf16.mxu0 %v844
      %1996 = vmatmul.mubr.bf16.gmra.mrb[0].mxu0 %v843
      %v1997 = vpop.f32.mrb[0].mxu0
      %v1998 = vadd.f32 %v1901, %v1997
      %v1999 = vpop.f32.mrb[0].mxu0
      %v2000 = vpop.f32.mrb[0].mxu0
      %v2001 = vadd.f32 %v1904, %v2000
      %v2002 = vpop.f32.mrb[0].mxu0
      %2003 = vdwg.mxu0
      %2004 = vmatprep.subr.bf16.mxu0 0
      %2005 = vmatpush1.bf16.msra.mxu0 %v1407
      %2006 = vmatprep.subr.bf16.mxu0 0
      %2007 = vmatpush1.bf16.msra.mxu0 %v1408
      %2008 = vmatprep.subr.bf16.mxu0 0
      %2009 = vmatpush1.bf16.msra.mxu0 %v1409
      %2010 = vmatprep.subr.bf16.mxu0 0
      %2011 = vmatpush1.bf16.msra.mxu0 %v1410
      %2012 = vmatprep.subr.bf16.mxu0 0
      %2013 = vmatpush1.bf16.msra.mxu0 %v1411
      %2014 = vmatprep.subr.bf16.mxu0 0
      %2015 = vmatpush1.bf16.msra.mxu0 %v1412
      %2016 = vmatprep.subr.bf16.mxu0 0
      %2017 = vmatpush1.bf16.msra.mxu0 %v1413
      %2018 = vmatprep.subr.bf16.mxu0 0
      %2019 = vmatpush1.bf16.msra.mxu0 %v1414
      %2020 = vmatprep.subr.bf16.mxu0 0
      %2021 = vmatpush1.bf16.msra.mxu0 %v1415
      %2022 = vmatprep.subr.bf16.mxu0 0
      %2023 = vmatpush1.bf16.msra.mxu0 %v1416
      %2024 = vmatprep.subr.bf16.mxu0 0
      %2025 = vmatpush1.bf16.msra.mxu0 %v1417
      %2026 = vmatprep.subr.bf16.mxu0 0
      %2027 = vmatpush1.bf16.msra.mxu0 %v1418
      %2028 = vmatprep.subr.bf16.mxu0 0
      %2029 = vmatpush1.bf16.msra.mxu0 %v1419
      %2030 = vmatprep.subr.bf16.mxu0 0
      %2031 = vmatpush1.bf16.msra.mxu0 %v1420
      %2032 = vmatprep.subr.bf16.mxu0 0
      %2033 = vmatpush1.bf16.msra.mxu0 %v1421
      %2034 = vmatprep.subr.bf16.mxu0 0
      %2035 = vmatpush1.bf16.msra.mxu0 %v1422
      %2036 = vmatprep.mubr.bf16.mxu0 %v762
      %2037 = vmatmul.mubr.bf16.gmra.mrb[0].mxu0 %v761
      %v2038 = vpop.f32.mrb[0].mxu0
      %v2039 = vadd.f32 %v1942, %v2038
      %v2040 = vpop.f32.mrb[0].mxu0
      %v2041 = vpop.f32.mrb[0].mxu0
      %v2042 = vadd.f32 %v1945, %v2041
      %v2043 = vpop.f32.mrb[0].mxu0
      %2044 = vmatprep.mubr.bf16.mxu0 %v774
      %2045 = vmatmul.mubr.bf16.gmra.mrb[0].mxu0 %v773
      %v2046 = vpop.f32.mrb[0].mxu0
      %v2047 = vadd.f32 %v1950, %v2046
      %v2048 = vpop.f32.mrb[0].mxu0
      %v2049 = vpop.f32.mrb[0].mxu0
      %v2050 = vadd.f32 %v1953, %v2049
      %v2051 = vpop.f32.mrb[0].mxu0
      %2052 = vmatprep.mubr.bf16.mxu0 %v786
      %2053 = vmatmul.mubr.bf16.gmra.mrb[0].mxu0 %v785
      %v2054 = vpop.f32.mrb[0].mxu0
      %v2055 = vadd.f32 %v1958, %v2054
      %v2056 = vpop.f32.mrb[0].mxu0
      %v2057 = vpop.f32.mrb[0].mxu0
      %v2058 = vadd.f32 %v1961, %v2057
      %v2059 = vpop.f32.mrb[0].mxu0
      %2060 = vmatprep.mubr.bf16.mxu0 %v798
      %2061 = vmatmul.mubr.bf16.gmra.mrb[0].mxu0 %v797
      %v2062 = vpop.f32.mrb[0].mxu0
      %v2063 = vadd.f32 %v1966, %v2062
      %v2064 = vpop.f32.mrb[0].mxu0
      %v2065 = vpop.f32.mrb[0].mxu0
      %v2066 = vadd.f32 %v1969, %v2065
      %v2067 = vpop.f32.mrb[0].mxu0
      %2068 = vmatprep.mubr.bf16.mxu0 %v810
      %2069 = vmatmul.mubr.bf16.gmra.mrb[0].mxu0 %v809
      %v2070 = vpop.f32.mrb[0].mxu0
      %v2071 = vadd.f32 %v1974, %v2070
      %v2072 = vpop.f32.mrb[0].mxu0
      %v2073 = vpop.f32.mrb[0].mxu0
      %v2074 = vadd.f32 %v1977, %v2073
      %v2075 = vpop.f32.mrb[0].mxu0
      %2076 = vmatprep.mubr.bf16.mxu0 %v822
      %2077 = vmatmul.mubr.bf16.gmra.mrb[0].mxu0 %v821
      %v2078 = vpop.f32.mrb[0].mxu0
      %v2079 = vadd.f32 %v1982, %v2078
      %v2080 = vpop.f32.mrb[0].mxu0
      %v2081 = vpop.f32.mrb[0].mxu0
      %v2082 = vadd.f32 %v1985, %v2081
      %v2083 = vpop.f32.mrb[0].mxu0
      %2084 = vmatprep.mubr.bf16.mxu0 %v834
      %2085 = vmatmul.mubr.bf16.gmra.mrb[0].mxu0 %v833
      %v2086 = vpop.f32.mrb[0].mxu0
      %v2087 = vadd.f32 %v1990, %v2086
      %v2088 = vpop.f32.mrb[0].mxu0
      %v2089 = vpop.f32.mrb[0].mxu0
      %v2090 = vadd.f32 %v1993, %v2089
      %v2091 = vpop.f32.mrb[0].mxu0
      %2092 = vmatprep.mubr.bf16.mxu0 %v846
      %2093 = vmatmul.mubr.bf16.gmra.mrb[0].mxu0 %v845
      %v2094 = vpop.f32.mrb[0].mxu0
      %v2095 = vadd.f32 %v1998, %v2094
      %v2096 = vpop.f32.mrb[0].mxu0
      %v2097 = vpop.f32.mrb[0].mxu0
      %v2098 = vadd.f32 %v2001, %v2097
      %v2099 = vpop.f32.mrb[0].mxu0
      %2100 = vdwg.mxu0
      %v2101 = vadd.f32 %v2039, %v2042
      %v2102 = vrot.slane %v2101, 4
      %v2103 = vadd.f32 %v2101, %v2102
      %v2104 = vrot.slane %v2103, 2
      %v2105 = vadd.f32 %v2103, %v2104
      %v2106 = vrot.slane %v2105, 1
      %v2107 = vadd.f32 %v2105, %v2106
      %v2108 = vadd.f32 %v2047, %v2050
      %v2109 = vrot.slane %v2108, 4
      %v2110 = vadd.f32 %v2108, %v2109
      %v2111 = vrot.slane %v2110, 2
      %v2112 = vadd.f32 %v2110, %v2111
      %v2113 = vrot.slane %v2112, 1
      %v2114 = vadd.f32 %v2112, %v2113
      %v2115 = vadd.f32 %v2055, %v2058
      %v2116 = vrot.slane %v2115, 4
      %v2117 = vadd.f32 %v2115, %v2116
      %v2118 = vrot.slane %v2117, 2
      %v2119 = vadd.f32 %v2117, %v2118
      %v2120 = vrot.slane %v2119, 1
      %v2121 = vadd.f32 %v2119, %v2120
      %v2122 = vadd.f32 %v2063, %v2066
      %v2123 = vrot.slane %v2122, 4
      %v2124 = vadd.f32 %v2122, %v2123
      %v2125 = vrot.slane %v2124, 2
      %v2126 = vadd.f32 %v2124, %v2125
      %v2127 = vrot.slane %v2126, 1
      %v2128 = vadd.f32 %v2126, %v2127
      %v2129 = vadd.f32 %v2071, %v2074
      %v2130 = vrot.slane %v2129, 4
      %v2131 = vadd.f32 %v2129, %v2130
      %v2132 = vrot.slane %v2131, 2
      %v2133 = vadd.f32 %v2131, %v2132
      %v2134 = vrot.slane %v2133, 1
      %v2135 = vadd.f32 %v2133, %v2134
      %v2136 = vadd.f32 %v2079, %v2082
      %v2137 = vrot.slane %v2136, 4
      %v2138 = vadd.f32 %v2136, %v2137
      %v2139 = vrot.slane %v2138, 2
      %v2140 = vadd.f32 %v2138, %v2139
      %v2141 = vrot.slane %v2140, 1
      %v2142 = vadd.f32 %v2140, %v2141
      %v2143 = vadd.f32 %v2087, %v2090
      %v2144 = vrot.slane %v2143, 4
      %v2145 = vadd.f32 %v2143, %v2144
      %v2146 = vrot.slane %v2145, 2
      %v2147 = vadd.f32 %v2145, %v2146
      %v2148 = vrot.slane %v2147, 1
      %v2149 = vadd.f32 %v2147, %v2148
      %v2150 = vadd.f32 %v2095, %v2098
      %v2151 = vrot.slane %v2150, 4
      %v2152 = vadd.f32 %v2150, %v2151
      %v2153 = vrot.slane %v2152, 2
      %v2154 = vadd.f32 %v2152, %v2153
      %v2155 = vrot.slane %v2154, 1
      %v2156 = vadd.f32 %v2154, %v2155
      %v2157 = vld [vmem:[%s2] sm:$0x1]
      %v2159 = vlaneseq
      %v2160 = vshrl.u32 %v2159, 7
      %v2161 = vsub.s32 0, %v2160
      %v2162 = vrot.slane %v2157, %v2161
      %v2164 = vadd.f32 %v2107, %v2162
      %v2165 = vadd.f32 %v2114, %v2162
      %v2166 = vadd.f32 %v2121, %v2162
      %v2167 = vadd.f32 %v2128, %v2162
      %v2168 = vadd.f32 %v2135, %v2162
      %v2169 = vadd.f32 %v2142, %v2162
      %v2170 = vadd.f32 %v2149, %v2162
      %v2171 = vadd.f32 %v2156, %v2162
      %v2180 = vrot.slane %v2165, 7
      %vm2181 = vcmask 1041409
      %v2182 = vsel %vm2181, %v2180, %v2164
      %v2183 = vrot.slane %v2166, 6
      %vm2184 = vcmask 1042434
      %v2185 = vsel %vm2184, %v2183, %v2182
      %v2186 = vrot.slane %v2167, 5
      %vm2187 = vcmask 1043459
      %v2188 = vsel %vm2187, %v2186, %v2185
      %v2189 = vrot.slane %v2168, 4
      %vm2190 = vcmask 1044484
      %v2191 = vsel %vm2190, %v2189, %v2188
      %v2192 = vrot.slane %v2169, 3
      %vm2193 = vcmask 1045509
      %v2194 = vsel %vm2193, %v2192, %v2191
      %v2195 = vrot.slane %v2170, 2
      %vm2196 = vcmask 1046534
      %v2197 = vsel %vm2196, %v2195, %v2194
      %v2198 = vrot.slane %v2171, 1
      %vm2199 = vcmask 1047559
      %v2200 = vsel %vm2199, %v2198, %v2197
      %2202 = vst [vmem:[%s173] sm:$0xff] %v2200
      %p2203 = scmp.lt.s32.totalorder %s14, 1
      %s2204 = scalar_select %p2203, %s14, 1
      %s2205 = smul.addr %s2204, 8
      %s2206 = scalar_lea.vmem %s3, %s2205
      // Predicated region
      $region33: #{bird_classifier_head.1} parent=31 // pred_check
        %p2207 = pneg %p100
      $region34: #{bird_classifier_head.1} parent=31 // pred_check_branch
        %2209 = sbr.rel (%p2207) target = $region36
      $region35: #{bird_classifier_head.1} parent=31 // pred_region
        _
      $region36: #{bird_classifier_head.1} parent=31 // pred_fallthru
        _
    $region32: #{bird_classifier_head.1} parent=5 // pred_fallthru
      _
    %p2210 = scmp.le.s32.totalorder 2, %s9
    // Predicated region
    $region37: #{bird_classifier_head.1} parent=5 // pred_check
      %p2211 = pneg %p2210
    $region38: #{bird_classifier_head.1} parent=5 // pred_check_branch
      %2213 = sbr.rel (%p2211) target = $region40
    $region39: #{bird_classifier_head.1} parent=5 // pred_region
      %s2214 = ssub.s32 %s9, 2
      // Predicated region
      $region41: #{bird_classifier_head.1} parent=39 // pred_check
        %p2215 = pneg %p106
      $region42: #{bird_classifier_head.1} parent=39 // pred_check_branch
        %2217 = sbr.rel (%p2215) target = $region44
      $region43: #{bird_classifier_head.1} parent=39 // pred_region
        %p2218 = scmp.lt.s32.totalorder %s15, 1
        %s2219 = scalar_select %p2218, %s15, 1
        %s2220 = smul.addr %s2219, 8
        %s2221 = scalar_lea.vmem %s3, %s2220
      $region44: #{bird_classifier_head.1} parent=39 // pred_fallthru
        _
    $region40: #{bird_classifier_head.1} parent=5 // pred_fallthru
      _
  $region6: #{bird_classifier_head.1} parent=0 // loop_footer
    %s13 = sadd.s32 1, %s9
  $region7: #{bird_classifier_head.1} parent=0 // loop_footer_branch
    %8 = sbr.rel target = $region3
  $region8: #{bird_classifier_head.1} parent=0 // loop_exit
    _

</llo_original>
